<compile_context>
chip_gen: v5e
topology: v5e:2x2
jax: 0.10.0
libtpu: 0.0.40
codegen_flags: <defaults>
</compile_context>

<pallas_src>
import jax
import jax.numpy as jnp
from jax.experimental import pallas as pl
from jax.experimental.pallas import tpu as pltpu


# --------------------------------------------------------------------------
# Parameter folding (runs ONCE, outside the jitted forward pass)
# --------------------------------------------------------------------------
def fold_params(params, H, W, B):
    """Fold torch-style parameters into MXU/VPU-friendly matrices.

    Activation layout: rows are (b, h) stacked -> B*H rows; a row is a length
    W*F vector packed as (w, f) with f minor (channels-last, lane-dense).
    """
    w0, b0 = params["w0"], params["b0"]          # (F0, C, 5, 5), (F0,)
    w1, b1 = params["w1"], params["b1"]          # (F1, F0, 3, 3), (F1,)
    wf, ws = params["wf"], params["ws"]          # (F0+F1, N), (H*W, N)
    bias = params["bias"]                        # (N,)

    F0, C = w0.shape[0], w0.shape[1]
    F1 = w1.shape[0]
    N = wf.shape[1]
    BH = B * H

    def band_cat_rows(w_oihw):
        """(fh*W*Cin, W*F) conv weight: horizontal 'same' taps folded into a
        banded block, vertical taps stacked along the contraction (row) axis.
        Row index = di*W*Cin + w'*Cin + c ; column index = w*F + f."""
        F, Cin, fh, fw = w_oihw.shape
        p = fw // 2
        taps = jnp.transpose(w_oihw, (2, 3, 1, 0)).astype(jnp.float32)  # (fh,fw,Cin,F)
        bands = []
        for di in range(fh):
            band = jnp.zeros((W * Cin, W * F), jnp.float32)
            for dj in range(fw):
                # ones at (w' = w + dj - p, w): column = row + (p - dj)
                E = jnp.eye(W, W, k=(p - dj), dtype=jnp.float32)
                band = band + jnp.kron(E, taps[di, dj])
            bands.append(band)
        return jnp.concatenate(bands, axis=0)                # (fh*W*Cin, W*F)

    def shift_masks(fh):
        """mask[di, r, 0] = 1 iff row r (h = r mod H) shifted by di-p stays
        inside its own image (vertical 'same' zero padding + image boundary)."""
        p = fh // 2
        h = jnp.arange(BH) % H
        m = []
        for di in range(fh):
            s = di - p
            m.append(((h + s >= 0) & (h + s < H)).astype(jnp.float32))
        return jnp.stack(m).reshape(fh, BH, 1)

    ws3 = ws.reshape(H, W, N).astype(jnp.float32)

    def readout_weight(wf_l):
        """Per-neuron elementwise readout weight, tiled over batch:
        Wc[n, b*H + h, w*F + f] = ws[h, w, n] * wf_l[f, n]."""
        F = wf_l.shape[0]
        A = ws3[:, :, None, :] * wf_l.astype(jnp.float32)[None, None, :, :]  # (H,W,F,N)
        A = jnp.transpose(A, (3, 0, 1, 2)).reshape(N, H, W * F)              # (N,H,W*F)
        return jnp.tile(A, (1, B, 1))                                        # (N,B*H,W*F)

    # per-image row pooling: pool[b, r] = 1 iff r // H == b
    pool = jnp.kron(jnp.eye(B, dtype=jnp.float32), jnp.ones((1, H), jnp.float32))

    return dict(
        w0cat=band_cat_rows(w0).astype(jnp.bfloat16),         # (fh0*W*C,  W*F0) bf16
        mask0=shift_masks(w0.shape[2]),                       # (fh0, B*H, 1)   f32
        b0row=jnp.tile(b0.astype(jnp.float32), W).reshape(1, W * F0),
        w1cat=band_cat_rows(w1).astype(jnp.bfloat16),         # (fh1*W*F0, W*F1) bf16
        mask1=shift_masks(w1.shape[2]),                       # (fh1, B*H, 1)   f32
        b1row=jnp.tile(b1.astype(jnp.float32), W).reshape(1, W * F1),
        wc0=readout_weight(wf[:F0]),                          # (N, B*H, W*F0)  f32
        wc1=readout_weight(wf[F0:]),                          # (N, B*H, W*F1)  f32
        pool=pool,                                            # (B, B*H)        f32
        bias=bias.reshape(1, N).astype(jnp.float32),
    )


# --------------------------------------------------------------------------
# Fused forward pass: one Pallas kernel, everything VMEM-resident
# --------------------------------------------------------------------------
def cnn_dense_forward(folded, x):
    """x: stimulus in NCHW [B, C, H, W] (PyTorch convention)."""
    B, C, H, W = x.shape
    BH = B * H
    F0 = folded["b0row"].shape[1] // W
    F1 = folded["b1row"].shape[1] // W
    N = folded["bias"].shape[1]
    fh0 = folded["mask0"].shape[0]
    fh1 = folded["mask1"].shape[0]
    WF0, WF1, WC = W * F0, W * F1, W * C

    # single tiny layout op on the raw input: rows are (b,h), lanes (w,c), c minor
    x2d = jnp.transpose(x, (0, 2, 3, 1)).reshape(BH, WC)

    def shifted_stack(rows, fh, mask_ref):
        """rows: (B*H, L) f32 -> (B*H, fh*L): vertically shifted copies
        (static sublane slices of a zero-padded copy) with per-image boundary
        masking. Pure VPU/XLU work; frees the MXU."""
        p = fh // 2
        L = rows.shape[1]
        z = jnp.zeros((p, L), jnp.float32)
        xp = jnp.concatenate([z, rows, z], axis=0)            # (B*H + 2p, L)
        pieces = []
        for di in range(fh):
            sh = xp[di:di + BH, :]                            # row r -> rows[r + di - p]
            pieces.append(sh * mask_ref[di])                  # zero across image edges
        return jnp.concatenate(pieces, axis=1)                # (B*H, fh*L)

    def kernel(x_ref, w0_ref, m0_ref, b0_ref, w1_ref, m1_ref, b1_ref,
               wc0_ref, wc1_ref, pool_ref, bias_ref, o_ref):
        rows = x_ref[...]                                     # (B*H, W*C) f32

        # ---- conv layer 0: 5x5 'same' + bias + relu (ONE bf16 matmul) ------
        xc0 = shifted_stack(rows, fh0, m0_ref).astype(jnp.bfloat16)   # (BH, fh0*W*C)
        acc0 = jnp.dot(xc0, w0_ref[...], preferred_element_type=jnp.float32)
        h0 = jnp.maximum(acc0 + b0_ref[...], 0.0)             # (B*H, W*F0) f32

        # ---- conv layer 1: 3x3 'same' + bias + relu (ONE bf16 matmul) ------
        xc1 = shifted_stack(h0, fh1, m1_ref).astype(jnp.bfloat16)     # (BH, fh1*W*F0)
        acc1 = jnp.dot(xc1, w1_ref[...], preferred_element_type=jnp.float32)
        h1 = jnp.maximum(acc1 + b1_ref[...], 0.0)             # (B*H, W*F1) f32

        # ---- readout (scaffold = concat[h0, h1]): per-neuron VPU weights ---
        cols = []
        for n in range(N):                                    # static, N is tiny
            s = (jnp.sum(h0 * wc0_ref[n], axis=1, keepdims=True)
                 + jnp.sum(h1 * wc1_ref[n], axis=1, keepdims=True))   # (B*H, 1)
            cols.append(s)
        Z = jnp.concatenate(cols, axis=1)                     # (B*H, N)

        # per-image pooling over the H rows + bias, then Softplus, single store
        z = jnp.dot(pool_ref[...], Z, preferred_element_type=jnp.float32) \
            + bias_ref[...]                                   # (B, N)
        o_ref[...] = jnp.where(z > 20.0, z,
                               jnp.log1p(jnp.exp(jnp.minimum(z, 20.0))))

    args = (x2d, folded["w0cat"], folded["mask0"], folded["b0row"],
            folded["w1cat"], folded["mask1"], folded["b1row"],
            folded["wc0"], folded["wc1"], folded["pool"], folded["bias"])

    def full_spec(a):
        nd = a.ndim
        return pl.BlockSpec(a.shape, lambda i, _nd=nd: (0,) * _nd)

    flops = (2 * BH * (fh0 * WC * WF0 + fh1 * WF0 * WF1)      # conv matmuls
             + 4 * BH * N * (WF0 + WF1)                       # readout mul+add
             + 2 * B * BH * N)                                # pooling matmul
    bytes_accessed = sum(int(a.size) * a.dtype.itemsize for a in args) + B * N * 4

    return pl.pallas_call(
        kernel,
        out_shape=jax.ShapeDtypeStruct((B, N), jnp.float32),
        grid=(1,),
        in_specs=[full_spec(a) for a in args],
        out_specs=pl.BlockSpec((B, N), lambda i: (0, 0)),
        compiler_params=pltpu.CompilerParams(
            dimension_semantics=("arbitrary",)),
        cost_estimate=pl.CostEstimate(flops=flops, transcendentals=B * N,
                                      bytes_accessed=bytes_accessed),
    )(*args)


# --------------------------------------------------------------------------
# Pure-JAX reference (sanity check only)
# --------------------------------------------------------------------------
def reference_forward(params, x):
    def conv_ref(x, w, b):
        y = jax.lax.conv_general_dilated(
            x, w, (1, 1), "SAME", dimension_numbers=("NCHW", "OIHW", "NCHW"))
        return jax.nn.relu(y + b[None, :, None, None])

    h0 = conv_ref(x, params["w0"], params["b0"])
    h1 = conv_ref(h0, params["w1"], params["b1"])
    core_out = jnp.concatenate([h0, h1], axis=1)
    B, C, H, W = core_out.shape
    ws = params["ws"].reshape(H, W, -1)
    out = jnp.einsum("bcxy,xyn,cn->bn", core_out, ws, params["wf"])
    out = out + params["bias"]
    return jax.nn.softplus(out)


# --------------------------------------------------------------------------
if __name__ == "__main__":
    # input_dims = [C=4, H=16, W=16, 1], num_subunits=[8, 8], filter_width=[5, 3],
    # cids -> 6 neurons, scaffold=[0, 1] -> core_subunits = 16
    B, C, H, W = 2, 4, 16, 16
    F0, F1 = 8, 8
    NCELLS = 6
    CORE_SUB = F0 + F1

    key = jax.random.PRNGKey(0)
    ks = jax.random.split(key, 8)

    params = {
        "w0": 0.1 * jax.random.normal(ks[0], (F0, C, 5, 5), jnp.float32),
        "b0": 0.1 * jax.random.normal(ks[1], (F0,), jnp.float32),
        "w1": 0.1 * jax.random.normal(ks[2], (F1, F0, 3, 3), jnp.float32),
        "b1": 0.1 * jax.random.normal(ks[3], (F1,), jnp.float32),
        "wf": 0.1 * jax.random.normal(ks[4], (CORE_SUB, NCELLS), jnp.float32),
        "ws": 0.1 * jax.random.normal(ks[5], (H * W, NCELLS), jnp.float32),
        "bias": 0.01 * jax.random.normal(ks[6], (NCELLS,), jnp.float32),
    }

    x = jax.random.normal(ks[7], (B, C, H, W), jnp.float32)   # NCHW stimulus

    folded = fold_params(params, H, W, B)                     # one-time folding
    fwd = jax.jit(cnn_dense_forward)

    out = jax.block_until_ready(fwd(folded, x))
    assert out.shape == (B, NCELLS), out.shape

    ref = reference_forward(params, x)
    assert jnp.allclose(out, ref, atol=5e-2, rtol=5e-2), (
        float(jnp.max(jnp.abs(out - ref))))

    print("KERNEL_OK")
</pallas_src>

<mosaic_0001>
module attributes {stable_mosaic.version = 11 : i64} {
  func.func @kernel(%arg0: i32, %arg1: memref<32x64xf32, #tpu.memory_space<vmem>>, %arg2: memref<320x128xbf16, #tpu.memory_space<vmem>>, %arg3: memref<5x32x1xf32, #tpu.memory_space<vmem>>, %arg4: memref<1x128xf32, #tpu.memory_space<vmem>>, %arg5: memref<384x128xbf16, #tpu.memory_space<vmem>>, %arg6: memref<3x32x1xf32, #tpu.memory_space<vmem>>, %arg7: memref<1x128xf32, #tpu.memory_space<vmem>>, %arg8: memref<6x32x128xf32, #tpu.memory_space<vmem>>, %arg9: memref<6x32x128xf32, #tpu.memory_space<vmem>>, %arg10: memref<2x32xf32, #tpu.memory_space<vmem>>, %arg11: memref<1x6xf32, #tpu.memory_space<vmem>>, %arg12: memref<2x6xf32, #tpu.memory_space<vmem>>) attributes {dimension_semantics = [#tpu.dimension_semantics<arbitrary>], iteration_bounds = array<i64: 1>, scalar_prefetch = 0 : i64, scratch_operands = 0 : i64, tpu.core_type = #tpu.core_type<tc>, window_params = [{pipeline_mode = #tpu.pipeline_mode<synchronous>, transform_indices = @transform_0, window_bounds = array<i64: 32, 64>}, {pipeline_mode = #tpu.pipeline_mode<synchronous>, transform_indices = @transform_1, window_bounds = array<i64: 320, 128>}, {pipeline_mode = #tpu.pipeline_mode<synchronous>, transform_indices = @transform_2, window_bounds = array<i64: 5, 32, 1>}, {pipeline_mode = #tpu.pipeline_mode<synchronous>, transform_indices = @transform_3, window_bounds = array<i64: 1, 128>}, {pipeline_mode = #tpu.pipeline_mode<synchronous>, transform_indices = @transform_4, window_bounds = array<i64: 384, 128>}, {pipeline_mode = #tpu.pipeline_mode<synchronous>, transform_indices = @transform_5, window_bounds = array<i64: 3, 32, 1>}, {pipeline_mode = #tpu.pipeline_mode<synchronous>, transform_indices = @transform_6, window_bounds = array<i64: 1, 128>}, {pipeline_mode = #tpu.pipeline_mode<synchronous>, transform_indices = @transform_7, window_bounds = array<i64: 6, 32, 128>}, {pipeline_mode = #tpu.pipeline_mode<synchronous>, transform_indices = @transform_8, window_bounds = array<i64: 6, 32, 128>}, {pipeline_mode = #tpu.pipeline_mode<synchronous>, transform_indices = @transform_9, window_bounds = array<i64: 2, 32>}, {pipeline_mode = #tpu.pipeline_mode<synchronous>, transform_indices = @transform_10, window_bounds = array<i64: 1, 6>}, {pipeline_mode = #tpu.pipeline_mode<synchronous>, transform_indices = @transform_11, window_bounds = array<i64: 2, 6>}]} {
    %c0 = arith.constant 0 : index
    %c0_0 = arith.constant 0 : index
    %0 = vector.load %arg1[%c0, %c0_0] : memref<32x64xf32, #tpu.memory_space<vmem>>, vector<32x64xf32>
    %cst = arith.constant 0.000000e+00 : f32
    %1 = vector.broadcast %cst : f32 to vector<2x64xf32>
    %2 = tpu.concatenate %1, %0, %1 in 0 : vector<2x64xf32>, vector<32x64xf32>, vector<2x64xf32> -> vector<36x64xf32>
    %3 = vector.extract_strided_slice %2 {offsets = [0, 0], sizes = [32, 64], strides = [1, 1]} : vector<36x64xf32> to vector<32x64xf32>
    %c0_1 = arith.constant 0 : index
    %c0_2 = arith.constant 0 : index
    %c0_3 = arith.constant 0 : index
    %4 = vector.load %arg3[%c0_1, %c0_2, %c0_3] : memref<5x32x1xf32, #tpu.memory_space<vmem>>, vector<1x32x1xf32>
    %5 = vector.shape_cast %4 : vector<1x32x1xf32> to vector<32x1xf32>
    %6 = vector.broadcast %5 : vector<32x1xf32> to vector<32x64xf32>
    %7 = arith.mulf %3, %6 : vector<32x64xf32>
    %8 = vector.extract_strided_slice %2 {offsets = [1, 0], sizes = [32, 64], strides = [1, 1]} : vector<36x64xf32> to vector<32x64xf32>
    %c1 = arith.constant 1 : index
    %c0_4 = arith.constant 0 : index
    %c0_5 = arith.constant 0 : index
    %9 = vector.load %arg3[%c1, %c0_4, %c0_5] : memref<5x32x1xf32, #tpu.memory_space<vmem>>, vector<1x32x1xf32>
    %10 = vector.shape_cast %9 : vector<1x32x1xf32> to vector<32x1xf32>
    %11 = vector.broadcast %10 : vector<32x1xf32> to vector<32x64xf32>
    %12 = arith.mulf %8, %11 : vector<32x64xf32>
    %13 = vector.extract_strided_slice %2 {offsets = [2, 0], sizes = [32, 64], strides = [1, 1]} : vector<36x64xf32> to vector<32x64xf32>
    %c2 = arith.constant 2 : index
    %c0_6 = arith.constant 0 : index
    %c0_7 = arith.constant 0 : index
    %14 = vector.load %arg3[%c2, %c0_6, %c0_7] : memref<5x32x1xf32, #tpu.memory_space<vmem>>, vector<1x32x1xf32>
    %15 = vector.shape_cast %14 : vector<1x32x1xf32> to vector<32x1xf32>
    %16 = vector.broadcast %15 : vector<32x1xf32> to vector<32x64xf32>
    %17 = arith.mulf %13, %16 : vector<32x64xf32>
    %18 = vector.extract_strided_slice %2 {offsets = [3, 0], sizes = [32, 64], strides = [1, 1]} : vector<36x64xf32> to vector<32x64xf32>
    %c3 = arith.constant 3 : index
    %c0_8 = arith.constant 0 : index
    %c0_9 = arith.constant 0 : index
    %19 = vector.load %arg3[%c3, %c0_8, %c0_9] : memref<5x32x1xf32, #tpu.memory_space<vmem>>, vector<1x32x1xf32>
    %20 = vector.shape_cast %19 : vector<1x32x1xf32> to vector<32x1xf32>
    %21 = vector.broadcast %20 : vector<32x1xf32> to vector<32x64xf32>
    %22 = arith.mulf %18, %21 : vector<32x64xf32>
    %23 = vector.extract_strided_slice %2 {offsets = [4, 0], sizes = [32, 64], strides = [1, 1]} : vector<36x64xf32> to vector<32x64xf32>
    %c4 = arith.constant 4 : index
    %c0_10 = arith.constant 0 : index
    %c0_11 = arith.constant 0 : index
    %24 = vector.load %arg3[%c4, %c0_10, %c0_11] : memref<5x32x1xf32, #tpu.memory_space<vmem>>, vector<1x32x1xf32>
    %25 = vector.shape_cast %24 : vector<1x32x1xf32> to vector<32x1xf32>
    %26 = vector.broadcast %25 : vector<32x1xf32> to vector<32x64xf32>
    %27 = arith.mulf %23, %26 : vector<32x64xf32>
    %28 = tpu.concatenate %7, %12, %17, %22, %27 in 1 : vector<32x64xf32>, vector<32x64xf32>, vector<32x64xf32>, vector<32x64xf32>, vector<32x64xf32> -> vector<32x320xf32>
    %29 = arith.truncf %28 : vector<32x320xf32> to vector<32x320xbf16>
    %c0_12 = arith.constant 0 : index
    %c0_13 = arith.constant 0 : index
    %30 = vector.load %arg2[%c0_12, %c0_13] : memref<320x128xbf16, #tpu.memory_space<vmem>>, vector<320x128xbf16>
    %cst_14 = arith.constant dense<0.000000e+00> : vector<32x128xf32>
    %31 = tpu.matmul %29, %30, %cst_14 {dimension_numbers = #tpu.dot_dimension_numbers<[1], [0], [0], [1], [0, 0, 1, 1], [], []>} : vector<32x320xbf16>, vector<320x128xbf16>, vector<32x128xf32> -> vector<32x128xf32>
    %c0_15 = arith.constant 0 : index
    %c0_16 = arith.constant 0 : index
    %32 = vector.load %arg4[%c0_15, %c0_16] : memref<1x128xf32, #tpu.memory_space<vmem>>, vector<1x128xf32>
    %33 = vector.broadcast %32 : vector<1x128xf32> to vector<32x128xf32>
    %34 = arith.addf %31, %33 : vector<32x128xf32>
    %cst_17 = arith.constant 0.000000e+00 : f32
    %35 = vector.broadcast %cst_17 : f32 to vector<32x128xf32>
    %36 = arith.maximumf %34, %35 : vector<32x128xf32>
    %cst_18 = arith.constant 0.000000e+00 : f32
    %37 = vector.broadcast %cst_18 : f32 to vector<1x128xf32>
    %38 = tpu.concatenate %37, %36, %37 in 0 : vector<1x128xf32>, vector<32x128xf32>, vector<1x128xf32> -> vector<34x128xf32>
    %39 = vector.extract_strided_slice %38 {offsets = [0, 0], sizes = [32, 128], strides = [1, 1]} : vector<34x128xf32> to vector<32x128xf32>
    %c0_19 = arith.constant 0 : index
    %c0_20 = arith.constant 0 : index
    %c0_21 = arith.constant 0 : index
    %40 = vector.load %arg6[%c0_19, %c0_20, %c0_21] : memref<3x32x1xf32, #tpu.memory_space<vmem>>, vector<1x32x1xf32>
    %41 = vector.shape_cast %40 : vector<1x32x1xf32> to vector<32x1xf32>
    %42 = vector.broadcast %41 : vector<32x1xf32> to vector<32x128xf32>
    %43 = arith.mulf %39, %42 : vector<32x128xf32>
    %44 = vector.extract_strided_slice %38 {offsets = [1, 0], sizes = [32, 128], strides = [1, 1]} : vector<34x128xf32> to vector<32x128xf32>
    %c1_22 = arith.constant 1 : index
    %c0_23 = arith.constant 0 : index
    %c0_24 = arith.constant 0 : index
    %45 = vector.load %arg6[%c1_22, %c0_23, %c0_24] : memref<3x32x1xf32, #tpu.memory_space<vmem>>, vector<1x32x1xf32>
    %46 = vector.shape_cast %45 : vector<1x32x1xf32> to vector<32x1xf32>
    %47 = vector.broadcast %46 : vector<32x1xf32> to vector<32x128xf32>
    %48 = arith.mulf %44, %47 : vector<32x128xf32>
    %49 = vector.extract_strided_slice %38 {offsets = [2, 0], sizes = [32, 128], strides = [1, 1]} : vector<34x128xf32> to vector<32x128xf32>
    %c2_25 = arith.constant 2 : index
    %c0_26 = arith.constant 0 : index
    %c0_27 = arith.constant 0 : index
    %50 = vector.load %arg6[%c2_25, %c0_26, %c0_27] : memref<3x32x1xf32, #tpu.memory_space<vmem>>, vector<1x32x1xf32>
    %51 = vector.shape_cast %50 : vector<1x32x1xf32> to vector<32x1xf32>
    %52 = vector.broadcast %51 : vector<32x1xf32> to vector<32x128xf32>
    %53 = arith.mulf %49, %52 : vector<32x128xf32>
    %54 = tpu.concatenate %43, %48, %53 in 1 : vector<32x128xf32>, vector<32x128xf32>, vector<32x128xf32> -> vector<32x384xf32>
    %55 = arith.truncf %54 : vector<32x384xf32> to vector<32x384xbf16>
    %c0_28 = arith.constant 0 : index
    %c0_29 = arith.constant 0 : index
    %56 = vector.load %arg5[%c0_28, %c0_29] : memref<384x128xbf16, #tpu.memory_space<vmem>>, vector<384x128xbf16>
    %cst_30 = arith.constant dense<0.000000e+00> : vector<32x128xf32>
    %57 = tpu.matmul %55, %56, %cst_30 {dimension_numbers = #tpu.dot_dimension_numbers<[1], [0], [0], [1], [0, 0, 1, 1], [], []>} : vector<32x384xbf16>, vector<384x128xbf16>, vector<32x128xf32> -> vector<32x128xf32>
    %c0_31 = arith.constant 0 : index
    %c0_32 = arith.constant 0 : index
    %58 = vector.load %arg7[%c0_31, %c0_32] : memref<1x128xf32, #tpu.memory_space<vmem>>, vector<1x128xf32>
    %59 = vector.broadcast %58 : vector<1x128xf32> to vector<32x128xf32>
    %60 = arith.addf %57, %59 : vector<32x128xf32>
    %cst_33 = arith.constant 0.000000e+00 : f32
    %61 = vector.broadcast %cst_33 : f32 to vector<32x128xf32>
    %62 = arith.maximumf %60, %61 : vector<32x128xf32>
    %c0_34 = arith.constant 0 : index
    %c0_35 = arith.constant 0 : index
    %c0_36 = arith.constant 0 : index
    %63 = vector.load %arg8[%c0_34, %c0_35, %c0_36] : memref<6x32x128xf32, #tpu.memory_space<vmem>>, vector<1x32x128xf32>
    %64 = vector.shape_cast %63 : vector<1x32x128xf32> to vector<32x128xf32>
    %65 = arith.mulf %36, %64 : vector<32x128xf32>
    %cst_37 = arith.constant dense<0.000000e+00> : vector<32xf32>
    %66 = vector.multi_reduction <add>, %65, %cst_37 [1] : vector<32x128xf32> to vector<32xf32>
    %67 = vector.shape_cast %66 : vector<32xf32> to vector<32x1xf32>
    %c0_38 = arith.constant 0 : index
    %c0_39 = arith.constant 0 : index
    %c0_40 = arith.constant 0 : index
    %68 = vector.load %arg9[%c0_38, %c0_39, %c0_40] : memref<6x32x128xf32, #tpu.memory_space<vmem>>, vector<1x32x128xf32>
    %69 = vector.shape_cast %68 : vector<1x32x128xf32> to vector<32x128xf32>
    %70 = arith.mulf %62, %69 : vector<32x128xf32>
    %cst_41 = arith.constant dense<0.000000e+00> : vector<32xf32>
    %71 = vector.multi_reduction <add>, %70, %cst_41 [1] : vector<32x128xf32> to vector<32xf32>
    %72 = vector.shape_cast %71 : vector<32xf32> to vector<32x1xf32>
    %73 = arith.addf %67, %72 : vector<32x1xf32>
    %c1_42 = arith.constant 1 : index
    %c0_43 = arith.constant 0 : index
    %c0_44 = arith.constant 0 : index
    %74 = vector.load %arg8[%c1_42, %c0_43, %c0_44] : memref<6x32x128xf32, #tpu.memory_space<vmem>>, vector<1x32x128xf32>
    %75 = vector.shape_cast %74 : vector<1x32x128xf32> to vector<32x128xf32>
    %76 = arith.mulf %36, %75 : vector<32x128xf32>
    %cst_45 = arith.constant dense<0.000000e+00> : vector<32xf32>
    %77 = vector.multi_reduction <add>, %76, %cst_45 [1] : vector<32x128xf32> to vector<32xf32>
    %78 = vector.shape_cast %77 : vector<32xf32> to vector<32x1xf32>
    %c1_46 = arith.constant 1 : index
    %c0_47 = arith.constant 0 : index
    %c0_48 = arith.constant 0 : index
    %79 = vector.load %arg9[%c1_46, %c0_47, %c0_48] : memref<6x32x128xf32, #tpu.memory_space<vmem>>, vector<1x32x128xf32>
    %80 = vector.shape_cast %79 : vector<1x32x128xf32> to vector<32x128xf32>
    %81 = arith.mulf %62, %80 : vector<32x128xf32>
    %cst_49 = arith.constant dense<0.000000e+00> : vector<32xf32>
    %82 = vector.multi_reduction <add>, %81, %cst_49 [1] : vector<32x128xf32> to vector<32xf32>
    %83 = vector.shape_cast %82 : vector<32xf32> to vector<32x1xf32>
    %84 = arith.addf %78, %83 : vector<32x1xf32>
    %c2_50 = arith.constant 2 : index
    %c0_51 = arith.constant 0 : index
    %c0_52 = arith.constant 0 : index
    %85 = vector.load %arg8[%c2_50, %c0_51, %c0_52] : memref<6x32x128xf32, #tpu.memory_space<vmem>>, vector<1x32x128xf32>
    %86 = vector.shape_cast %85 : vector<1x32x128xf32> to vector<32x128xf32>
    %87 = arith.mulf %36, %86 : vector<32x128xf32>
    %cst_53 = arith.constant dense<0.000000e+00> : vector<32xf32>
    %88 = vector.multi_reduction <add>, %87, %cst_53 [1] : vector<32x128xf32> to vector<32xf32>
    %89 = vector.shape_cast %88 : vector<32xf32> to vector<32x1xf32>
    %c2_54 = arith.constant 2 : index
    %c0_55 = arith.constant 0 : index
    %c0_56 = arith.constant 0 : index
    %90 = vector.load %arg9[%c2_54, %c0_55, %c0_56] : memref<6x32x128xf32, #tpu.memory_space<vmem>>, vector<1x32x128xf32>
    %91 = vector.shape_cast %90 : vector<1x32x128xf32> to vector<32x128xf32>
    %92 = arith.mulf %62, %91 : vector<32x128xf32>
    %cst_57 = arith.constant dense<0.000000e+00> : vector<32xf32>
    %93 = vector.multi_reduction <add>, %92, %cst_57 [1] : vector<32x128xf32> to vector<32xf32>
    %94 = vector.shape_cast %93 : vector<32xf32> to vector<32x1xf32>
    %95 = arith.addf %89, %94 : vector<32x1xf32>
    %c3_58 = arith.constant 3 : index
    %c0_59 = arith.constant 0 : index
    %c0_60 = arith.constant 0 : index
    %96 = vector.load %arg8[%c3_58, %c0_59, %c0_60] : memref<6x32x128xf32, #tpu.memory_space<vmem>>, vector<1x32x128xf32>
    %97 = vector.shape_cast %96 : vector<1x32x128xf32> to vector<32x128xf32>
    %98 = arith.mulf %36, %97 : vector<32x128xf32>
    %cst_61 = arith.constant dense<0.000000e+00> : vector<32xf32>
    %99 = vector.multi_reduction <add>, %98, %cst_61 [1] : vector<32x128xf32> to vector<32xf32>
    %100 = vector.shape_cast %99 : vector<32xf32> to vector<32x1xf32>
    %c3_62 = arith.constant 3 : index
    %c0_63 = arith.constant 0 : index
    %c0_64 = arith.constant 0 : index
    %101 = vector.load %arg9[%c3_62, %c0_63, %c0_64] : memref<6x32x128xf32, #tpu.memory_space<vmem>>, vector<1x32x128xf32>
    %102 = vector.shape_cast %101 : vector<1x32x128xf32> to vector<32x128xf32>
    %103 = arith.mulf %62, %102 : vector<32x128xf32>
    %cst_65 = arith.constant dense<0.000000e+00> : vector<32xf32>
    %104 = vector.multi_reduction <add>, %103, %cst_65 [1] : vector<32x128xf32> to vector<32xf32>
    %105 = vector.shape_cast %104 : vector<32xf32> to vector<32x1xf32>
    %106 = arith.addf %100, %105 : vector<32x1xf32>
    %c4_66 = arith.constant 4 : index
    %c0_67 = arith.constant 0 : index
    %c0_68 = arith.constant 0 : index
    %107 = vector.load %arg8[%c4_66, %c0_67, %c0_68] : memref<6x32x128xf32, #tpu.memory_space<vmem>>, vector<1x32x128xf32>
    %108 = vector.shape_cast %107 : vector<1x32x128xf32> to vector<32x128xf32>
    %109 = arith.mulf %36, %108 : vector<32x128xf32>
    %cst_69 = arith.constant dense<0.000000e+00> : vector<32xf32>
    %110 = vector.multi_reduction <add>, %109, %cst_69 [1] : vector<32x128xf32> to vector<32xf32>
    %111 = vector.shape_cast %110 : vector<32xf32> to vector<32x1xf32>
    %c4_70 = arith.constant 4 : index
    %c0_71 = arith.constant 0 : index
    %c0_72 = arith.constant 0 : index
    %112 = vector.load %arg9[%c4_70, %c0_71, %c0_72] : memref<6x32x128xf32, #tpu.memory_space<vmem>>, vector<1x32x128xf32>
    %113 = vector.shape_cast %112 : vector<1x32x128xf32> to vector<32x128xf32>
    %114 = arith.mulf %62, %113 : vector<32x128xf32>
    %cst_73 = arith.constant dense<0.000000e+00> : vector<32xf32>
    %115 = vector.multi_reduction <add>, %114, %cst_73 [1] : vector<32x128xf32> to vector<32xf32>
    %116 = vector.shape_cast %115 : vector<32xf32> to vector<32x1xf32>
    %117 = arith.addf %111, %116 : vector<32x1xf32>
    %c5 = arith.constant 5 : index
    %c0_74 = arith.constant 0 : index
    %c0_75 = arith.constant 0 : index
    %118 = vector.load %arg8[%c5, %c0_74, %c0_75] : memref<6x32x128xf32, #tpu.memory_space<vmem>>, vector<1x32x128xf32>
    %119 = vector.shape_cast %118 : vector<1x32x128xf32> to vector<32x128xf32>
    %120 = arith.mulf %36, %119 : vector<32x128xf32>
    %cst_76 = arith.constant dense<0.000000e+00> : vector<32xf32>
    %121 = vector.multi_reduction <add>, %120, %cst_76 [1] : vector<32x128xf32> to vector<32xf32>
    %122 = vector.shape_cast %121 : vector<32xf32> to vector<32x1xf32>
    %c5_77 = arith.constant 5 : index
    %c0_78 = arith.constant 0 : index
    %c0_79 = arith.constant 0 : index
    %123 = vector.load %arg9[%c5_77, %c0_78, %c0_79] : memref<6x32x128xf32, #tpu.memory_space<vmem>>, vector<1x32x128xf32>
    %124 = vector.shape_cast %123 : vector<1x32x128xf32> to vector<32x128xf32>
    %125 = arith.mulf %62, %124 : vector<32x128xf32>
    %cst_80 = arith.constant dense<0.000000e+00> : vector<32xf32>
    %126 = vector.multi_reduction <add>, %125, %cst_80 [1] : vector<32x128xf32> to vector<32xf32>
    %127 = vector.shape_cast %126 : vector<32xf32> to vector<32x1xf32>
    %128 = arith.addf %122, %127 : vector<32x1xf32>
    %129 = tpu.concatenate %73, %84, %95, %106, %117, %128 in 1 : vector<32x1xf32>, vector<32x1xf32>, vector<32x1xf32>, vector<32x1xf32>, vector<32x1xf32>, vector<32x1xf32> -> vector<32x6xf32>
    %c0_81 = arith.constant 0 : index
    %c0_82 = arith.constant 0 : index
    %130 = vector.load %arg10[%c0_81, %c0_82] : memref<2x32xf32, #tpu.memory_space<vmem>>, vector<2x32xf32>
    %cst_83 = arith.constant dense<0.000000e+00> : vector<2x6xf32>
    %131 = tpu.matmul %130, %129, %cst_83 {dimension_numbers = #tpu.dot_dimension_numbers<[1], [0], [0], [1], [0, 0, 1, 1], [], []>} : vector<2x32xf32>, vector<32x6xf32>, vector<2x6xf32> -> vector<2x6xf32>
    %c0_84 = arith.constant 0 : index
    %c0_85 = arith.constant 0 : index
    %132 = vector.load %arg11[%c0_84, %c0_85] : memref<1x6xf32, #tpu.memory_space<vmem>>, vector<1x6xf32>
    %133 = vector.broadcast %132 : vector<1x6xf32> to vector<2x6xf32>
    %134 = arith.addf %131, %133 : vector<2x6xf32>
    %cst_86 = arith.constant 2.000000e+01 : f32
    %135 = vector.broadcast %cst_86 : f32 to vector<2x6xf32>
    %136 = arith.cmpf ogt, %134, %135 : vector<2x6xf32>
    %cst_87 = arith.constant 2.000000e+01 : f32
    %137 = vector.broadcast %cst_87 : f32 to vector<2x6xf32>
    %138 = arith.minimumf %134, %137 : vector<2x6xf32>
    %139 = math.exp %138 : vector<2x6xf32>
    %140 = math.log1p %139 : vector<2x6xf32>
    %141 = arith.select %136, %134, %140 : vector<2x6xi1>, vector<2x6xf32>
    %c0_88 = arith.constant 0 : index
    %c0_89 = arith.constant 0 : index
    %142 = vector.load %arg12[%c0_88, %c0_89] : memref<2x6xf32, #tpu.memory_space<vmem>>, vector<2x6xf32>
    tpu.vector_store %arg12[%c0_88, %c0_89], %141 {strides = array<i32>} : memref<2x6xf32, #tpu.memory_space<vmem>>, vector<2x6xf32>,
    return
  }
  func.func @transform_0(%arg0: i32) -> (i32, i32) {
    %c0_i32 = arith.constant 0 : i32
    %c0_i32_0 = arith.constant 0 : i32
    %c0_i32_1 = arith.constant 0 : i32
    return %c0_i32, %c0_i32_0 : i32, i32
  }
  func.func @transform_1(%arg0: i32) -> (i32, i32) {
    %c0_i32 = arith.constant 0 : i32
    %c0_i32_0 = arith.constant 0 : i32
    %c0_i32_1 = arith.constant 0 : i32
    return %c0_i32, %c0_i32_0 : i32, i32
  }
  func.func @transform_2(%arg0: i32) -> (i32, i32, i32) {
    %c0_i32 = arith.constant 0 : i32
    %c0_i32_0 = arith.constant 0 : i32
    %c0_i32_1 = arith.constant 0 : i32
    %c0_i32_2 = arith.constant 0 : i32
    return %c0_i32, %c0_i32_0, %c0_i32_1 : i32, i32, i32
  }
  func.func @transform_3(%arg0: i32) -> (i32, i32) {
    %c0_i32 = arith.constant 0 : i32
    %c0_i32_0 = arith.constant 0 : i32
    %c0_i32_1 = arith.constant 0 : i32
    return %c0_i32, %c0_i32_0 : i32, i32
  }
  func.func @transform_4(%arg0: i32) -> (i32, i32) {
    %c0_i32 = arith.constant 0 : i32
    %c0_i32_0 = arith.constant 0 : i32
    %c0_i32_1 = arith.constant 0 : i32
    return %c0_i32, %c0_i32_0 : i32, i32
  }
  func.func @transform_5(%arg0: i32) -> (i32, i32, i32) {
    %c0_i32 = arith.constant 0 : i32
    %c0_i32_0 = arith.constant 0 : i32
    %c0_i32_1 = arith.constant 0 : i32
    %c0_i32_2 = arith.constant 0 : i32
    return %c0_i32, %c0_i32_0, %c0_i32_1 : i32, i32, i32
  }
  func.func @transform_6(%arg0: i32) -> (i32, i32) {
    %c0_i32 = arith.constant 0 : i32
    %c0_i32_0 = arith.constant 0 : i32
    %c0_i32_1 = arith.constant 0 : i32
    return %c0_i32, %c0_i32_0 : i32, i32
  }
  func.func @transform_7(%arg0: i32) -> (i32, i32, i32) {
    %c0_i32 = arith.constant 0 : i32
    %c0_i32_0 = arith.constant 0 : i32
    %c0_i32_1 = arith.constant 0 : i32
    %c0_i32_2 = arith.constant 0 : i32
    return %c0_i32, %c0_i32_0, %c0_i32_1 : i32, i32, i32
  }
  func.func @transform_8(%arg0: i32) -> (i32, i32, i32) {
    %c0_i32 = arith.constant 0 : i32
    %c0_i32_0 = arith.constant 0 : i32
    %c0_i32_1 = arith.constant 0 : i32
    %c0_i32_2 = arith.constant 0 : i32
    return %c0_i32, %c0_i32_0, %c0_i32_1 : i32, i32, i32
  }
  func.func @transform_9(%arg0: i32) -> (i32, i32) {
    %c0_i32 = arith.constant 0 : i32
    %c0_i32_0 = arith.constant 0 : i32
    %c0_i32_1 = arith.constant 0 : i32
    return %c0_i32, %c0_i32_0 : i32, i32
  }
  func.func @transform_10(%arg0: i32) -> (i32, i32) {
    %c0_i32 = arith.constant 0 : i32
    %c0_i32_0 = arith.constant 0 : i32
    %c0_i32_1 = arith.constant 0 : i32
    return %c0_i32, %c0_i32_0 : i32, i32
  }
  func.func @transform_11(%arg0: i32) -> (i32, i32) {
    %c0_i32 = arith.constant 0 : i32
    %c0_i32_0 = arith.constant 0 : i32
    %c0_i32_1 = arith.constant 0 : i32
    return %c0_i32, %c0_i32_0 : i32, i32
  }
}

</mosaic_0001>

<llo_original>
// kernel: cnn_dense_forward.1
$region0: #{cnn_dense_forward.1}
  #allocation0 [shape = 'u32[]', space=smem, size = 0x4, offset = 0x4, fixed_abs, tag = 'smem constant byte address 0x4 - core index']
  #allocation1 [shape = 'u32[72,128]{1,0:T(1,128)}', space=vmem, size = 0x9000, scoped, tag = 'internal scratch']
  %s0 = inlined_call_operand.vmem [shape: f32[32,64], index: 0, kind: input, shape index: {}]
  %s1 = inlined_call_operand.vmem [shape: bf16[320,128], index: 1, kind: input, shape index: {}]
  %s2 = inlined_call_operand.vmem [shape: f32[5,32,1], index: 2, kind: input, shape index: {}]
  %s3 = inlined_call_operand.vmem [shape: f32[1,128], index: 3, kind: input, shape index: {}]
  %s4 = inlined_call_operand.vmem [shape: bf16[384,128], index: 4, kind: input, shape index: {}]
  %s5 = inlined_call_operand.vmem [shape: f32[3,32,1], index: 5, kind: input, shape index: {}]
  %s6 = inlined_call_operand.vmem [shape: f32[1,128], index: 6, kind: input, shape index: {}]
  %s7 = inlined_call_operand.vmem [shape: f32[6,32,128], index: 7, kind: input, shape index: {}]
  %s8 = inlined_call_operand.vmem [shape: f32[6,32,128], index: 8, kind: input, shape index: {}]
  %s9 = inlined_call_operand.vmem [shape: f32[2,32], index: 9, kind: input, shape index: {}]
  %s10 = inlined_call_operand.vmem [shape: f32[1,6], index: 10, kind: input, shape index: {}]
  %s11 = inlined_call_operand.hbm [shape: f32[2,6], index: 11, kind: output, shape index: {}]
  %s12 = sld [smem:[#allocation0]]
  $region54: #{cnn_dense_forward.1} parent=0
    _
  %s14 = ssub.s32 1, %s12
  %s15 = scalar_select 0, %s14, %s12
  $region1: #{cnn_dense_forward.1} parent=0
    #allocation2 [shape = 'u8[1024]{0}', space=vmem, size = 0x400, scoped, tag = 'output window, operand 0, single buffered']
    #allocation3 [shape = 's32[1]{0}', space=sflag, size = 0x4, scoped, tag = 'scoped memory for cnn_dense_forward.1']
    %16 = vsyncpa [#allocation3], 0
    // Predicated region
    $region2: #{cnn_dense_forward.1} parent=1 // pred_check
      _
    $region3: #{cnn_dense_forward.1} parent=1 // pred_check_branch
      %18 = sbr.rel (0) target = $region5
    $region4: #{cnn_dense_forward.1} parent=1 // pred_region
      _
    $region5: #{cnn_dense_forward.1} parent=1 // pred_fallthru
      _
    // Predicated region
    $region6: #{cnn_dense_forward.1} parent=1 // pred_check
      _
    $region7: #{cnn_dense_forward.1} parent=1 // pred_check_branch
      %20 = sbr.rel (0) target = $region9
    $region8: #{cnn_dense_forward.1} parent=1 // pred_region
      _
    $region9: #{cnn_dense_forward.1} parent=1 // pred_fallthru
      _
    // Predicated region
    $region10: #{cnn_dense_forward.1} parent=1 // pred_check
      _
    $region11: #{cnn_dense_forward.1} parent=1 // pred_check_branch
      %22 = sbr.rel (0) target = $region13
    $region12: #{cnn_dense_forward.1} parent=1 // pred_region
      _
    $region13: #{cnn_dense_forward.1} parent=1 // pred_fallthru
      _
    // Predicated region
    $region14: #{cnn_dense_forward.1} parent=1 // pred_check
      _
    $region15: #{cnn_dense_forward.1} parent=1 // pred_check_branch
      %24 = sbr.rel (0) target = $region17
    $region16: #{cnn_dense_forward.1} parent=1 // pred_region
      _
    $region17: #{cnn_dense_forward.1} parent=1 // pred_fallthru
      _
    // Predicated region
    $region18: #{cnn_dense_forward.1} parent=1 // pred_check
      _
    $region19: #{cnn_dense_forward.1} parent=1 // pred_check_branch
      %26 = sbr.rel (0) target = $region21
    $region20: #{cnn_dense_forward.1} parent=1 // pred_region
      _
    $region21: #{cnn_dense_forward.1} parent=1 // pred_fallthru
      _
    // Predicated region
    $region22: #{cnn_dense_forward.1} parent=1 // pred_check
      _
    $region23: #{cnn_dense_forward.1} parent=1 // pred_check_branch
      %28 = sbr.rel (0) target = $region25
    $region24: #{cnn_dense_forward.1} parent=1 // pred_region
      _
    $region25: #{cnn_dense_forward.1} parent=1 // pred_fallthru
      _
    // Predicated region
    $region26: #{cnn_dense_forward.1} parent=1 // pred_check
      _
    $region27: #{cnn_dense_forward.1} parent=1 // pred_check_branch
      %30 = sbr.rel (0) target = $region29
    $region28: #{cnn_dense_forward.1} parent=1 // pred_region
      _
    $region29: #{cnn_dense_forward.1} parent=1 // pred_fallthru
      _
    // Predicated region
    $region30: #{cnn_dense_forward.1} parent=1 // pred_check
      _
    $region31: #{cnn_dense_forward.1} parent=1 // pred_check_branch
      %32 = sbr.rel (0) target = $region33
    $region32: #{cnn_dense_forward.1} parent=1 // pred_region
      _
    $region33: #{cnn_dense_forward.1} parent=1 // pred_fallthru
      _
    // Predicated region
    $region34: #{cnn_dense_forward.1} parent=1 // pred_check
      _
    $region35: #{cnn_dense_forward.1} parent=1 // pred_check_branch
      %34 = sbr.rel (0) target = $region37
    $region36: #{cnn_dense_forward.1} parent=1 // pred_region
      _
    $region37: #{cnn_dense_forward.1} parent=1 // pred_fallthru
      _
    // Predicated region
    $region38: #{cnn_dense_forward.1} parent=1 // pred_check
      _
    $region39: #{cnn_dense_forward.1} parent=1 // pred_check_branch
      %36 = sbr.rel (0) target = $region41
    $region40: #{cnn_dense_forward.1} parent=1 // pred_region
      _
    $region41: #{cnn_dense_forward.1} parent=1 // pred_fallthru
      _
    // Predicated region
    $region42: #{cnn_dense_forward.1} parent=1 // pred_check
      _
    $region43: #{cnn_dense_forward.1} parent=1 // pred_check_branch
      %38 = sbr.rel (0) target = $region45
    $region44: #{cnn_dense_forward.1} parent=1 // pred_region
      _
    $region45: #{cnn_dense_forward.1} parent=1 // pred_fallthru
      _
    %v40 = vld [vmem:[%s0] sm:$0xff]
    %v41 = vld [vmem:[%s0 + $0x8] sm:$0xff]
    %v42 = vld [vmem:[%s0 + $0x10] sm:$0xff]
    %v43 = vld [vmem:[%s0 + $0x18] sm:$0xff]
    %vm48 = vcmask 1041408
    %v49 = vrot.slane %v40, 6
    %v50 = vrot.slane %v41, 6
    %v51 = vsel %vm48, %v49, %v50
    %v52 = vrot.slane %v42, 6
    %v53 = vsel %vm48, %v50, %v52
    %v54 = vrot.slane %v43, 6
    %v55 = vsel %vm48, %v52, %v54
    %v61 = vsel %vm48, 0.0, %v49
    %v62 = vsel %vm48, %v54, 0.0
    %v63 = vld [vmem:[%s2] sm:$0xff]
    %v64 = vld [vmem:[%s2 + $0x8] sm:$0xff]
    %v65 = vld [vmem:[%s2 + $0x10] sm:$0xff]
    %v66 = vld [vmem:[%s2 + $0x18] sm:$0xff]
    %68 = vset.pattern.permute.xlu0 0
    %69 = vperm.xlu0 %68, %v63
    %v70 = vpop.permute.xlu0 %69
    %73 = vset.pattern.permute.xlu0 0
    %74 = vperm.xlu0 %73, %v64
    %v75 = vpop.permute.xlu0 %74
    %78 = vset.pattern.permute.xlu0 0
    %79 = vperm.xlu0 %78, %v65
    %v80 = vpop.permute.xlu0 %79
    %83 = vset.pattern.permute.xlu0 0
    %84 = vperm.xlu0 %83, %v66
    %v85 = vpop.permute.xlu0 %84
    %v87 = vmul.f32 %v61, %v70
    %v88 = vmul.f32 %v51, %v75
    %v89 = vmul.f32 %v53, %v80
    %v90 = vmul.f32 %v55, %v85
    %s91 = scalar_lea.vmem %s2, 32
    %v92 = vld [vmem:[%s91] sm:$0xff]
    %v93 = vld [vmem:[%s91 + $0x8] sm:$0xff]
    %v94 = vld [vmem:[%s91 + $0x10] sm:$0xff]
    %v95 = vld [vmem:[%s91 + $0x18] sm:$0xff]
    %97 = vset.pattern.permute.xlu0 0
    %98 = vperm.xlu0 %97, %v92
    %v99 = vpop.permute.xlu0 %98
    %101 = vset.pattern.permute.xlu0 0
    %102 = vperm.xlu0 %101, %v93
    %v103 = vpop.permute.xlu0 %102
    %105 = vset.pattern.permute.xlu0 0
    %106 = vperm.xlu0 %105, %v94
    %v107 = vpop.permute.xlu0 %106
    %109 = vset.pattern.permute.xlu0 0
    %110 = vperm.xlu0 %109, %v95
    %v111 = vpop.permute.xlu0 %110
    %vm112 = vcmask 1040384
    %v113 = vrot.slane %v99, 7
    %v114 = vrot.slane %v103, 7
    %v115 = vsel %vm112, %v113, %v114
    %v116 = vrot.slane %v107, 7
    %v117 = vsel %vm112, %v114, %v116
    %v118 = vrot.slane %v111, 7
    %v119 = vsel %vm112, %v116, %v118
    %v125 = vmul.f32 %v61, %v113
    %v126 = vmul.f32 %v51, %v115
    %v127 = vmul.f32 %v53, %v117
    %v128 = vmul.f32 %v55, %v119
    %v129 = vmul.f32 %v62, %v118
    %s130 = scalar_lea.vmem %s2, 64
    %v131 = vld [vmem:[%s130] sm:$0xff]
    %v132 = vld [vmem:[%s130 + $0x8] sm:$0xff]
    %v133 = vld [vmem:[%s130 + $0x10] sm:$0xff]
    %v134 = vld [vmem:[%s130 + $0x18] sm:$0xff]
    %136 = vset.pattern.permute.xlu0 0
    %137 = vperm.xlu0 %136, %v131
    %v138 = vpop.permute.xlu0 %137
    %140 = vset.pattern.permute.xlu0 0
    %141 = vperm.xlu0 %140, %v132
    %v142 = vpop.permute.xlu0 %141
    %144 = vset.pattern.permute.xlu0 0
    %145 = vperm.xlu0 %144, %v133
    %v146 = vpop.permute.xlu0 %145
    %148 = vset.pattern.permute.xlu0 0
    %149 = vperm.xlu0 %148, %v134
    %v150 = vpop.permute.xlu0 %149
    %v151 = vrot.slane %v138, 6
    %v152 = vrot.slane %v142, 6
    %v153 = vsel %vm48, %v151, %v152
    %v154 = vrot.slane %v146, 6
    %v155 = vsel %vm48, %v152, %v154
    %v156 = vrot.slane %v150, 6
    %v157 = vsel %vm48, %v154, %v156
    %v163 = vmul.f32 %v61, %v151
    %v164 = vmul.f32 %v51, %v153
    %v165 = vmul.f32 %v53, %v155
    %v166 = vmul.f32 %v55, %v157
    %v167 = vmul.f32 %v62, %v156
    %s168 = scalar_lea.vmem %s2, 96
    %v169 = vld [vmem:[%s168] sm:$0xff]
    %v170 = vld [vmem:[%s168 + $0x8] sm:$0xff]
    %v171 = vld [vmem:[%s168 + $0x10] sm:$0xff]
    %v172 = vld [vmem:[%s168 + $0x18] sm:$0xff]
    %174 = vset.pattern.permute.xlu0 0
    %175 = vperm.xlu0 %174, %v169
    %v176 = vpop.permute.xlu0 %175
    %178 = vset.pattern.permute.xlu0 0
    %179 = vperm.xlu0 %178, %v170
    %v180 = vpop.permute.xlu0 %179
    %182 = vset.pattern.permute.xlu0 0
    %183 = vperm.xlu0 %182, %v171
    %v184 = vpop.permute.xlu0 %183
    %186 = vset.pattern.permute.xlu0 0
    %187 = vperm.xlu0 %186, %v172
    %v188 = vpop.permute.xlu0 %187
    %vm189 = vcmask 1042432
    %v190 = vrot.slane %v176, 5
    %v191 = vrot.slane %v180, 5
    %v192 = vsel %vm189, %v190, %v191
    %v193 = vrot.slane %v184, 5
    %v194 = vsel %vm189, %v191, %v193
    %v195 = vrot.slane %v188, 5
    %v196 = vsel %vm189, %v193, %v195
    %v202 = vmul.f32 %v61, %v190
    %v203 = vmul.f32 %v51, %v192
    %v204 = vmul.f32 %v53, %v194
    %v205 = vmul.f32 %v55, %v196
    %v206 = vmul.f32 %v62, %v195
    %s207 = scalar_lea.vmem %s2, 128
    %v208 = vld [vmem:[%s207] sm:$0xff]
    %v209 = vld [vmem:[%s207 + $0x8] sm:$0xff]
    %v210 = vld [vmem:[%s207 + $0x10] sm:$0xff]
    %v211 = vld [vmem:[%s207 + $0x18] sm:$0xff]
    %213 = vset.pattern.permute.xlu0 0
    %214 = vperm.xlu0 %213, %v208
    %v215 = vpop.permute.xlu0 %214
    %217 = vset.pattern.permute.xlu0 0
    %218 = vperm.xlu0 %217, %v209
    %v219 = vpop.permute.xlu0 %218
    %221 = vset.pattern.permute.xlu0 0
    %222 = vperm.xlu0 %221, %v210
    %v223 = vpop.permute.xlu0 %222
    %225 = vset.pattern.permute.xlu0 0
    %226 = vperm.xlu0 %225, %v211
    %v227 = vpop.permute.xlu0 %226
    %vm228 = vcmask 1043456
    %v229 = vrot.slane %v215, 4
    %v230 = vrot.slane %v219, 4
    %v231 = vsel %vm228, %v229, %v230
    %v232 = vrot.slane %v223, 4
    %v233 = vsel %vm228, %v230, %v232
    %v234 = vrot.slane %v227, 4
    %v235 = vsel %vm228, %v232, %v234
    %v241 = vmul.f32 %v61, %v229
    %v242 = vmul.f32 %v51, %v231
    %v243 = vmul.f32 %v53, %v233
    %v244 = vmul.f32 %v55, %v235
    %v245 = vmul.f32 %v62, %v234
    %vm251 = vcmask 1046528
    %v252 = vrot.slane %v125, 1
    %v253 = vrot.slane %v126, 1
    %v254 = vsel %vm251, %v252, %v253
    %v255 = vrot.slane %v127, 1
    %v256 = vsel %vm251, %v253, %v255
    %v257 = vrot.slane %v128, 1
    %v258 = vsel %vm251, %v255, %v257
    %v259 = vrot.slane %v129, 1
    %v260 = vsel %vm251, %v257, %v259
    %261 = vrot.lane.b32.xlu0 %v254, 64
    %v262 = vpop.permute.xlu0 %261
    %263 = vrot.lane.b32.xlu0 %v256, 64
    %v264 = vpop.permute.xlu0 %263
    %265 = vrot.lane.b32.xlu0 %v258, 64
    %v266 = vpop.permute.xlu0 %265
    %267 = vrot.lane.b32.xlu0 %v260, 64
    %v268 = vpop.permute.xlu0 %267
    %vm278 = vcmask 1045504
    %v279 = vrot.slane %v163, 2
    %v280 = vrot.slane %v164, 2
    %v281 = vsel %vm278, %v279, %v280
    %v282 = vrot.slane %v165, 2
    %v283 = vsel %vm278, %v280, %v282
    %v284 = vrot.slane %v166, 2
    %v285 = vsel %vm278, %v282, %v284
    %v286 = vrot.slane %v167, 2
    %v287 = vsel %vm278, %v284, %v286
    %vm297 = vcmask 1044480
    %v298 = vrot.slane %v202, 3
    %v299 = vrot.slane %v203, 3
    %v300 = vsel %vm297, %v298, %v299
    %v301 = vrot.slane %v204, 3
    %v302 = vsel %vm297, %v299, %v301
    %v303 = vrot.slane %v205, 3
    %v304 = vsel %vm297, %v301, %v303
    %v305 = vrot.slane %v206, 3
    %v306 = vsel %vm297, %v303, %v305
    %307 = vrot.lane.b32.xlu0 %v300, 64
    %v308 = vpop.permute.xlu0 %307
    %309 = vrot.lane.b32.xlu0 %v302, 64
    %v310 = vpop.permute.xlu0 %309
    %311 = vrot.lane.b32.xlu0 %v304, 64
    %v312 = vpop.permute.xlu0 %311
    %313 = vrot.lane.b32.xlu0 %v306, 64
    %v314 = vpop.permute.xlu0 %313
    %v324 = vrot.slane %v241, 4
    %v325 = vrot.slane %v242, 4
    %v326 = vsel %vm228, %v324, %v325
    %v327 = vrot.slane %v243, 4
    %v328 = vsel %vm228, %v325, %v327
    %v329 = vrot.slane %v244, 4
    %v330 = vsel %vm228, %v327, %v329
    %v331 = vrot.slane %v245, 4
    %v332 = vsel %vm228, %v329, %v331
    %vm337 = vcmask 523264
    %v338 = vsel %vm337, %v87, %v262
    %v339 = vsel %vm337, %v88, %v264
    %v340 = vsel %vm337, %v89, %v266
    %v341 = vsel %vm337, %v90, %v268
    %v342 = vsel %vm337, %v281, %v308
    %v343 = vsel %vm337, %v283, %v310
    %v344 = vsel %vm337, %v285, %v312
    %v345 = vsel %vm337, %v287, %v314
    %v346 = vpack.c.bf16 %v339, %v338
    %v347 = vpack.c.bf16 %v343, %v342
    %v348 = vpack.c.bf16 %v328, %v326
    %v349 = vpack.c.bf16 %v341, %v340
    %v350 = vpack.c.bf16 %v345, %v344
    %v351 = vpack.c.bf16 %v332, %v330
    %v352 = vld [vmem:[%s1] sm:$0xf]
    %v353 = vld [vmem:[%s1 + $0x4] sm:$0xf]
    %v354 = vld [vmem:[%s1 + $0x8] sm:$0xf]
    %v355 = vld [vmem:[%s1 + $0xc] sm:$0xf]
    %v356 = vld [vmem:[%s1 + $0x10] sm:$0xf]
    %v357 = vld [vmem:[%s1 + $0x14] sm:$0xf]
    %v358 = vld [vmem:[%s1 + $0x18] sm:$0xf]
    %v359 = vld [vmem:[%s1 + $0x1c] sm:$0xf]
    %v360 = vld [vmem:[%s1 + $0x20] sm:$0xf]
    %v361 = vld [vmem:[%s1 + $0x24] sm:$0xf]
    %v362 = vld [vmem:[%s1 + $0x28] sm:$0xf]
    %v363 = vld [vmem:[%s1 + $0x2c] sm:$0xf]
    %v364 = vld [vmem:[%s1 + $0x30] sm:$0xf]
    %v365 = vld [vmem:[%s1 + $0x34] sm:$0xf]
    %v366 = vld [vmem:[%s1 + $0x38] sm:$0xf]
    %v367 = vld [vmem:[%s1 + $0x3c] sm:$0xf]
    %v368 = vld [vmem:[%s1 + $0x40] sm:$0xf]
    %v369 = vld [vmem:[%s1 + $0x44] sm:$0xf]
    %v370 = vld [vmem:[%s1 + $0x48] sm:$0xf]
    %v371 = vld [vmem:[%s1 + $0x4c] sm:$0xf]
    %v372 = vld [vmem:[%s1 + $0x50] sm:$0xf]
    %v373 = vld [vmem:[%s1 + $0x54] sm:$0xf]
    %v374 = vld [vmem:[%s1 + $0x58] sm:$0xf]
    %v375 = vld [vmem:[%s1 + $0x5c] sm:$0xf]
    %v376 = vld [vmem:[%s1 + $0x60] sm:$0xf]
    %v377 = vld [vmem:[%s1 + $0x64] sm:$0xf]
    %v378 = vld [vmem:[%s1 + $0x68] sm:$0xf]
    %v379 = vld [vmem:[%s1 + $0x6c] sm:$0xf]
    %v380 = vld [vmem:[%s1 + $0x70] sm:$0xf]
    %v381 = vld [vmem:[%s1 + $0x74] sm:$0xf]
    %v382 = vld [vmem:[%s1 + $0x78] sm:$0xf]
    %v383 = vld [vmem:[%s1 + $0x7c] sm:$0xf]
    %v384 = vld [vmem:[%s1 + $0x80] sm:$0xf]
    %v385 = vld [vmem:[%s1 + $0x84] sm:$0xf]
    %v386 = vld [vmem:[%s1 + $0x88] sm:$0xf]
    %v387 = vld [vmem:[%s1 + $0x8c] sm:$0xf]
    %v388 = vld [vmem:[%s1 + $0x90] sm:$0xf]
    %v389 = vld [vmem:[%s1 + $0x94] sm:$0xf]
    %v390 = vld [vmem:[%s1 + $0x98] sm:$0xf]
    %v391 = vld [vmem:[%s1 + $0x9c] sm:$0xf]
    %v392 = vld [vmem:[%s3] sm:$0x1]
    %v394 = vperm.slane %v392, 0
    %v436 = vunpack.c.l.b16 %v352
    %v437 = vunpack.c.l.b16 %v353
    %v438 = vunpack.c.l.b16 %v354
    %v439 = vunpack.c.l.b16 %v355
    %v440 = vunpack.c.l.b16 %v356
    %v441 = vunpack.c.l.b16 %v357
    %v442 = vunpack.c.l.b16 %v358
    %v443 = vunpack.c.l.b16 %v359
    %v444 = vunpack.c.l.b16 %v360
    %v445 = vunpack.c.l.b16 %v361
    %v446 = vunpack.c.l.b16 %v362
    %v447 = vunpack.c.l.b16 %v363
    %v448 = vunpack.c.l.b16 %v364
    %v449 = vunpack.c.l.b16 %v365
    %v450 = vunpack.c.l.b16 %v366
    %v451 = vunpack.c.l.b16 %v367
    %v452 = vunpack.c.l.b16 %v368
    %v453 = vunpack.c.l.b16 %v369
    %v454 = vunpack.c.l.b16 %v370
    %v455 = vunpack.c.l.b16 %v371
    %v456 = vunpack.c.l.b16 %v372
    %v457 = vunpack.c.l.b16 %v373
    %v458 = vunpack.c.l.b16 %v374
    %v459 = vunpack.c.l.b16 %v375
    %v460 = vunpack.c.l.b16 %v376
    %v461 = vunpack.c.l.b16 %v377
    %v462 = vunpack.c.l.b16 %v378
    %v463 = vunpack.c.l.b16 %v379
    %v464 = vunpack.c.l.b16 %v380
    %v465 = vunpack.c.l.b16 %v381
    %v466 = vunpack.c.l.b16 %v382
    %v467 = vunpack.c.l.b16 %v383
    %v468 = vunpack.c.l.b16 %v384
    %v469 = vunpack.c.l.b16 %v385
    %v470 = vunpack.c.l.b16 %v386
    %v471 = vunpack.c.l.b16 %v387
    %v472 = vunpack.c.l.b16 %v388
    %v473 = vunpack.c.l.b16 %v389
    %v474 = vunpack.c.l.b16 %v390
    %v475 = vunpack.c.l.b16 %v391
    %v476 = vpack.c.b16 %v437, %v436
    %v477 = vpack.c.b16 %v439, %v438
    %v478 = vpack.c.b16 %v441, %v440
    %v479 = vpack.c.b16 %v443, %v442
    %v480 = vpack.c.b16 %v445, %v444
    %v481 = vpack.c.b16 %v447, %v446
    %v482 = vpack.c.b16 %v449, %v448
    %v483 = vpack.c.b16 %v451, %v450
    %v484 = vpack.c.b16 %v453, %v452
    %v485 = vpack.c.b16 %v455, %v454
    %v486 = vpack.c.b16 %v457, %v456
    %v487 = vpack.c.b16 %v459, %v458
    %v488 = vpack.c.b16 %v461, %v460
    %v489 = vpack.c.b16 %v463, %v462
    %v490 = vpack.c.b16 %v465, %v464
    %v491 = vpack.c.b16 %v467, %v466
    %v492 = vpack.c.b16 %v469, %v468
    %v493 = vpack.c.b16 %v471, %v470
    %v494 = vpack.c.b16 %v473, %v472
    %v495 = vpack.c.b16 %v475, %v474
    %v517 = vsel %vm337, %v348, 0
    %v520 = vsel %vm337, %v351, 0
    %522 = vmatpush.bf16.msra.mxu0 %v483
    %523 = vmatpush.bf16.msra.mxu0 %v482
    %524 = vmatpush.bf16.msra.mxu0 %v481
    %525 = vmatpush.bf16.msra.mxu0 %v480
    %526 = vmatpush.bf16.msra.mxu0 %v479
    %527 = vmatpush.bf16.msra.mxu0 %v478
    %528 = vmatpush.bf16.msra.mxu0 %v477
    %529 = vmatpush.bf16.msra.mxu0 %v476
    %530 = vmatmul.bf16.gmra.mxu0 %v346
    %v531 = vpop.f32.mrf.mxu0
    %v532 = vadd.f32 %v394, %v531
    %v533 = vpop.f32.mrf.mxu0
    %v534 = vadd.f32 %v394, %v533
    %535 = vmatmul.bf16.gmra.mxu0 %v349
    %v536 = vpop.f32.mrf.mxu0
    %v537 = vadd.f32 %v394, %v536
    %v538 = vpop.f32.mrf.mxu0
    %v539 = vadd.f32 %v394, %v538
    %540 = vdwg.mxu0
    %541 = vmatpush.bf16.msra.mxu0 %v491
    %542 = vmatpush.bf16.msra.mxu0 %v490
    %543 = vmatpush.bf16.msra.mxu0 %v489
    %544 = vmatpush.bf16.msra.mxu0 %v488
    %545 = vmatpush.bf16.msra.mxu0 %v487
    %546 = vmatpush.bf16.msra.mxu0 %v486
    %547 = vmatpush.bf16.msra.mxu0 %v485
    %548 = vmatpush.bf16.msra.mxu0 %v484
    %549 = vmatmul.bf16.gmra.mxu0 %v347
    %v550 = vpop.f32.mrf.mxu0
    %v551 = vadd.f32 %v532, %v550
    %v552 = vpop.f32.mrf.mxu0
    %v553 = vadd.f32 %v534, %v552
    %554 = vmatmul.bf16.gmra.mxu0 %v350
    %v555 = vpop.f32.mrf.mxu0
    %v556 = vadd.f32 %v537, %v555
    %v557 = vpop.f32.mrf.mxu0
    %v558 = vadd.f32 %v539, %v557
    %559 = vdwg.mxu0
    %560 = vmatpush.bf16.msra.mxu0 0
    %561 = vmatpush.bf16.msra.mxu0 0
    %562 = vmatpush.bf16.msra.mxu0 0
    %563 = vmatpush.bf16.msra.mxu0 0
    %564 = vmatpush.bf16.msra.mxu0 %v495
    %565 = vmatpush.bf16.msra.mxu0 %v494
    %566 = vmatpush.bf16.msra.mxu0 %v493
    %567 = vmatpush.bf16.msra.mxu0 %v492
    %568 = vmatmul.bf16.gmra.mxu0 %v517
    %v569 = vpop.f32.mrf.mxu0
    %v570 = vadd.f32 %v551, %v569
    %v571 = vpop.f32.mrf.mxu0
    %v572 = vadd.f32 %v553, %v571
    %573 = vmatmul.bf16.gmra.mxu0 %v520
    %v574 = vpop.f32.mrf.mxu0
    %v575 = vadd.f32 %v556, %v574
    %v576 = vpop.f32.mrf.mxu0
    %v577 = vadd.f32 %v558, %v576
    %578 = vdwg.mxu0
    %v579 = vmax.f32 %v570, 0.0
    %v580 = vmax.f32 %v572, 0.0
    %v581 = vmax.f32 %v575, 0.0
    %v582 = vmax.f32 %v577, 0.0
    %v587 = vrot.slane %v579, 7
    %v588 = vrot.slane %v580, 7
    %v589 = vsel %vm112, %v587, %v588
    %v590 = vrot.slane %v581, 7
    %v591 = vsel %vm112, %v588, %v590
    %v592 = vrot.slane %v582, 7
    %v593 = vsel %vm112, %v590, %v592
    %v599 = vsel %vm112, 0.0, %v587
    %v600 = vsel %vm112, %v592, 0.0
    %v601 = vld [vmem:[%s5] sm:$0xff]
    %v602 = vld [vmem:[%s5 + $0x8] sm:$0xff]
    %v603 = vld [vmem:[%s5 + $0x10] sm:$0xff]
    %v604 = vld [vmem:[%s5 + $0x18] sm:$0xff]
    %606 = vset.pattern.permute.xlu0 0
    %607 = vperm.xlu0 %606, %v601
    %v608 = vpop.permute.xlu0 %607
    %611 = vset.pattern.permute.xlu0 0
    %612 = vperm.xlu0 %611, %v602
    %v613 = vpop.permute.xlu0 %612
    %616 = vset.pattern.permute.xlu0 0
    %617 = vperm.xlu0 %616, %v603
    %v618 = vpop.permute.xlu0 %617
    %621 = vset.pattern.permute.xlu0 0
    %622 = vperm.xlu0 %621, %v604
    %v623 = vpop.permute.xlu0 %622
    %v625 = vmul.f32 %v599, %v608
    %v626 = vmul.f32 %v589, %v613
    %v627 = vmul.f32 %v591, %v618
    %v628 = vmul.f32 %v593, %v623
    %s629 = scalar_lea.vmem %s5, 32
    %v630 = vld [vmem:[%s629] sm:$0xff]
    %v631 = vld [vmem:[%s629 + $0x8] sm:$0xff]
    %v632 = vld [vmem:[%s629 + $0x10] sm:$0xff]
    %v633 = vld [vmem:[%s629 + $0x18] sm:$0xff]
    %635 = vset.pattern.permute.xlu0 0
    %636 = vperm.xlu0 %635, %v630
    %v637 = vpop.permute.xlu0 %636
    %639 = vset.pattern.permute.xlu0 0
    %640 = vperm.xlu0 %639, %v631
    %v641 = vpop.permute.xlu0 %640
    %643 = vset.pattern.permute.xlu0 0
    %644 = vperm.xlu0 %643, %v632
    %v645 = vpop.permute.xlu0 %644
    %647 = vset.pattern.permute.xlu0 0
    %648 = vperm.xlu0 %647, %v633
    %v649 = vpop.permute.xlu0 %648
    %v650 = vrot.slane %v637, 7
    %v651 = vrot.slane %v641, 7
    %v652 = vsel %vm112, %v650, %v651
    %v653 = vrot.slane %v645, 7
    %v654 = vsel %vm112, %v651, %v653
    %v655 = vrot.slane %v649, 7
    %v656 = vsel %vm112, %v653, %v655
    %v662 = vmul.f32 %v599, %v650
    %v663 = vmul.f32 %v589, %v652
    %v664 = vmul.f32 %v591, %v654
    %v665 = vmul.f32 %v593, %v656
    %v666 = vmul.f32 %v600, %v655
    %s667 = scalar_lea.vmem %s5, 64
    %v668 = vld [vmem:[%s667] sm:$0xff]
    %v669 = vld [vmem:[%s667 + $0x8] sm:$0xff]
    %v670 = vld [vmem:[%s667 + $0x10] sm:$0xff]
    %v671 = vld [vmem:[%s667 + $0x18] sm:$0xff]
    %673 = vset.pattern.permute.xlu0 0
    %674 = vperm.xlu0 %673, %v668
    %v675 = vpop.permute.xlu0 %674
    %677 = vset.pattern.permute.xlu0 0
    %678 = vperm.xlu0 %677, %v669
    %v679 = vpop.permute.xlu0 %678
    %681 = vset.pattern.permute.xlu0 0
    %682 = vperm.xlu0 %681, %v670
    %v683 = vpop.permute.xlu0 %682
    %685 = vset.pattern.permute.xlu0 0
    %686 = vperm.xlu0 %685, %v671
    %v687 = vpop.permute.xlu0 %686
    %v688 = vrot.slane %v675, 6
    %v689 = vrot.slane %v679, 6
    %v690 = vsel %vm48, %v688, %v689
    %v691 = vrot.slane %v683, 6
    %v692 = vsel %vm48, %v689, %v691
    %v693 = vrot.slane %v687, 6
    %v694 = vsel %vm48, %v691, %v693
    %v700 = vmul.f32 %v599, %v688
    %v701 = vmul.f32 %v589, %v690
    %v702 = vmul.f32 %v591, %v692
    %v703 = vmul.f32 %v593, %v694
    %v704 = vmul.f32 %v600, %v693
    %v710 = vrot.slane %v662, 1
    %v711 = vrot.slane %v663, 1
    %v712 = vsel %vm251, %v710, %v711
    %v713 = vrot.slane %v664, 1
    %v714 = vsel %vm251, %v711, %v713
    %v715 = vrot.slane %v665, 1
    %v716 = vsel %vm251, %v713, %v715
    %v717 = vrot.slane %v666, 1
    %v718 = vsel %vm251, %v715, %v717
    %v728 = vrot.slane %v700, 2
    %v729 = vrot.slane %v701, 2
    %v730 = vsel %vm278, %v728, %v729
    %v731 = vrot.slane %v702, 2
    %v732 = vsel %vm278, %v729, %v731
    %v733 = vrot.slane %v703, 2
    %v734 = vsel %vm278, %v731, %v733
    %v735 = vrot.slane %v704, 2
    %v736 = vsel %vm278, %v733, %v735
    %v741 = vpack.c.bf16 %v626, %v625
    %v742 = vpack.c.bf16 %v714, %v712
    %v743 = vpack.c.bf16 %v732, %v730
    %v744 = vpack.c.bf16 %v628, %v627
    %v745 = vpack.c.bf16 %v718, %v716
    %v746 = vpack.c.bf16 %v736, %v734
    %v747 = vld [vmem:[%s4] sm:$0xf]
    %v748 = vld [vmem:[%s4 + $0x4] sm:$0xf]
    %v749 = vld [vmem:[%s4 + $0x8] sm:$0xf]
    %v750 = vld [vmem:[%s4 + $0xc] sm:$0xf]
    %v751 = vld [vmem:[%s4 + $0x10] sm:$0xf]
    %v752 = vld [vmem:[%s4 + $0x14] sm:$0xf]
    %v753 = vld [vmem:[%s4 + $0x18] sm:$0xf]
    %v754 = vld [vmem:[%s4 + $0x1c] sm:$0xf]
    %v755 = vld [vmem:[%s4 + $0x20] sm:$0xf]
    %v756 = vld [vmem:[%s4 + $0x24] sm:$0xf]
    %v757 = vld [vmem:[%s4 + $0x28] sm:$0xf]
    %v758 = vld [vmem:[%s4 + $0x2c] sm:$0xf]
    %v759 = vld [vmem:[%s4 + $0x30] sm:$0xf]
    %v760 = vld [vmem:[%s4 + $0x34] sm:$0xf]
    %v761 = vld [vmem:[%s4 + $0x38] sm:$0xf]
    %v762 = vld [vmem:[%s4 + $0x3c] sm:$0xf]
    %v763 = vld [vmem:[%s4 + $0x40] sm:$0xf]
    %v764 = vld [vmem:[%s4 + $0x44] sm:$0xf]
    %v765 = vld [vmem:[%s4 + $0x48] sm:$0xf]
    %v766 = vld [vmem:[%s4 + $0x4c] sm:$0xf]
    %v767 = vld [vmem:[%s4 + $0x50] sm:$0xf]
    %v768 = vld [vmem:[%s4 + $0x54] sm:$0xf]
    %v769 = vld [vmem:[%s4 + $0x58] sm:$0xf]
    %v770 = vld [vmem:[%s4 + $0x5c] sm:$0xf]
    %v771 = vld [vmem:[%s4 + $0x60] sm:$0xf]
    %v772 = vld [vmem:[%s4 + $0x64] sm:$0xf]
    %v773 = vld [vmem:[%s4 + $0x68] sm:$0xf]
    %v774 = vld [vmem:[%s4 + $0x6c] sm:$0xf]
    %v775 = vld [vmem:[%s4 + $0x70] sm:$0xf]
    %v776 = vld [vmem:[%s4 + $0x74] sm:$0xf]
    %v777 = vld [vmem:[%s4 + $0x78] sm:$0xf]
    %v778 = vld [vmem:[%s4 + $0x7c] sm:$0xf]
    %v779 = vld [vmem:[%s4 + $0x80] sm:$0xf]
    %v780 = vld [vmem:[%s4 + $0x84] sm:$0xf]
    %v781 = vld [vmem:[%s4 + $0x88] sm:$0xf]
    %v782 = vld [vmem:[%s4 + $0x8c] sm:$0xf]
    %v783 = vld [vmem:[%s4 + $0x90] sm:$0xf]
    %v784 = vld [vmem:[%s4 + $0x94] sm:$0xf]
    %v785 = vld [vmem:[%s4 + $0x98] sm:$0xf]
    %v786 = vld [vmem:[%s4 + $0x9c] sm:$0xf]
    %v787 = vld [vmem:[%s4 + $0xa0] sm:$0xf]
    %v788 = vld [vmem:[%s4 + $0xa4] sm:$0xf]
    %v789 = vld [vmem:[%s4 + $0xa8] sm:$0xf]
    %v790 = vld [vmem:[%s4 + $0xac] sm:$0xf]
    %v791 = vld [vmem:[%s4 + $0xb0] sm:$0xf]
    %v792 = vld [vmem:[%s4 + $0xb4] sm:$0xf]
    %v793 = vld [vmem:[%s4 + $0xb8] sm:$0xf]
    %v794 = vld [vmem:[%s4 + $0xbc] sm:$0xf]
    %v795 = vld [vmem:[%s6] sm:$0x1]
    %v797 = vperm.slane %v795, 0
    %v847 = vunpack.c.l.b16 %v747
    %v848 = vunpack.c.l.b16 %v748
    %v849 = vunpack.c.l.b16 %v749
    %v850 = vunpack.c.l.b16 %v750
    %v851 = vunpack.c.l.b16 %v751
    %v852 = vunpack.c.l.b16 %v752
    %v853 = vunpack.c.l.b16 %v753
    %v854 = vunpack.c.l.b16 %v754
    %v855 = vunpack.c.l.b16 %v755
    %v856 = vunpack.c.l.b16 %v756
    %v857 = vunpack.c.l.b16 %v757
    %v858 = vunpack.c.l.b16 %v758
    %v859 = vunpack.c.l.b16 %v759
    %v860 = vunpack.c.l.b16 %v760
    %v861 = vunpack.c.l.b16 %v761
    %v862 = vunpack.c.l.b16 %v762
    %v863 = vunpack.c.l.b16 %v763
    %v864 = vunpack.c.l.b16 %v764
    %v865 = vunpack.c.l.b16 %v765
    %v866 = vunpack.c.l.b16 %v766
    %v867 = vunpack.c.l.b16 %v767
    %v868 = vunpack.c.l.b16 %v768
    %v869 = vunpack.c.l.b16 %v769
    %v870 = vunpack.c.l.b16 %v770
    %v871 = vunpack.c.l.b16 %v771
    %v872 = vunpack.c.l.b16 %v772
    %v873 = vunpack.c.l.b16 %v773
    %v874 = vunpack.c.l.b16 %v774
    %v875 = vunpack.c.l.b16 %v775
    %v876 = vunpack.c.l.b16 %v776
    %v877 = vunpack.c.l.b16 %v777
    %v878 = vunpack.c.l.b16 %v778
    %v879 = vunpack.c.l.b16 %v779
    %v880 = vunpack.c.l.b16 %v780
    %v881 = vunpack.c.l.b16 %v781
    %v882 = vunpack.c.l.b16 %v782
    %v883 = vunpack.c.l.b16 %v783
    %v884 = vunpack.c.l.b16 %v784
    %v885 = vunpack.c.l.b16 %v785
    %v886 = vunpack.c.l.b16 %v786
    %v887 = vunpack.c.l.b16 %v787
    %v888 = vunpack.c.l.b16 %v788
    %v889 = vunpack.c.l.b16 %v789
    %v890 = vunpack.c.l.b16 %v790
    %v891 = vunpack.c.l.b16 %v791
    %v892 = vunpack.c.l.b16 %v792
    %v893 = vunpack.c.l.b16 %v793
    %v894 = vunpack.c.l.b16 %v794
    %v895 = vpack.c.b16 %v848, %v847
    %v896 = vpack.c.b16 %v850, %v849
    %v897 = vpack.c.b16 %v852, %v851
    %v898 = vpack.c.b16 %v854, %v853
    %v899 = vpack.c.b16 %v856, %v855
    %v900 = vpack.c.b16 %v858, %v857
    %v901 = vpack.c.b16 %v860, %v859
    %v902 = vpack.c.b16 %v862, %v861
    %v903 = vpack.c.b16 %v864, %v863
    %v904 = vpack.c.b16 %v866, %v865
    %v905 = vpack.c.b16 %v868, %v867
    %v906 = vpack.c.b16 %v870, %v869
    %v907 = vpack.c.b16 %v872, %v871
    %v908 = vpack.c.b16 %v874, %v873
    %v909 = vpack.c.b16 %v876, %v875
    %v910 = vpack.c.b16 %v878, %v877
    %v911 = vpack.c.b16 %v880, %v879
    %v912 = vpack.c.b16 %v882, %v881
    %v913 = vpack.c.b16 %v884, %v883
    %v914 = vpack.c.b16 %v886, %v885
    %v915 = vpack.c.b16 %v888, %v887
    %v916 = vpack.c.b16 %v890, %v889
    %v917 = vpack.c.b16 %v892, %v891
    %v918 = vpack.c.b16 %v894, %v893
    %943 = vmatpush.bf16.msra.mxu0 %v902
    %944 = vmatpush.bf16.msra.mxu0 %v901
    %945 = vmatpush.bf16.msra.mxu0 %v900
    %946 = vmatpush.bf16.msra.mxu0 %v899
    %947 = vmatpush.bf16.msra.mxu0 %v898
    %948 = vmatpush.bf16.msra.mxu0 %v897
    %949 = vmatpush.bf16.msra.mxu0 %v896
    %950 = vmatpush.bf16.msra.mxu0 %v895
    %951 = vmatmul.bf16.gmra.mxu0 %v741
    %v952 = vpop.f32.mrf.mxu0
    %v953 = vadd.f32 %v797, %v952
    %v954 = vpop.f32.mrf.mxu0
    %v955 = vadd.f32 %v797, %v954
    %956 = vmatmul.bf16.gmra.mxu0 %v744
    %v957 = vpop.f32.mrf.mxu0
    %v958 = vadd.f32 %v797, %v957
    %v959 = vpop.f32.mrf.mxu0
    %v960 = vadd.f32 %v797, %v959
    %961 = vdwg.mxu0
    %962 = vmatpush.bf16.msra.mxu0 %v910
    %963 = vmatpush.bf16.msra.mxu0 %v909
    %964 = vmatpush.bf16.msra.mxu0 %v908
    %965 = vmatpush.bf16.msra.mxu0 %v907
    %966 = vmatpush.bf16.msra.mxu0 %v906
    %967 = vmatpush.bf16.msra.mxu0 %v905
    %968 = vmatpush.bf16.msra.mxu0 %v904
    %969 = vmatpush.bf16.msra.mxu0 %v903
    %970 = vmatmul.bf16.gmra.mxu0 %v742
    %v971 = vpop.f32.mrf.mxu0
    %v972 = vadd.f32 %v953, %v971
    %v973 = vpop.f32.mrf.mxu0
    %v974 = vadd.f32 %v955, %v973
    %975 = vmatmul.bf16.gmra.mxu0 %v745
    %v976 = vpop.f32.mrf.mxu0
    %v977 = vadd.f32 %v958, %v976
    %v978 = vpop.f32.mrf.mxu0
    %v979 = vadd.f32 %v960, %v978
    %980 = vdwg.mxu0
    %981 = vmatpush.bf16.msra.mxu0 %v918
    %982 = vmatpush.bf16.msra.mxu0 %v917
    %983 = vmatpush.bf16.msra.mxu0 %v916
    %984 = vmatpush.bf16.msra.mxu0 %v915
    %985 = vmatpush.bf16.msra.mxu0 %v914
    %986 = vmatpush.bf16.msra.mxu0 %v913
    %987 = vmatpush.bf16.msra.mxu0 %v912
    %988 = vmatpush.bf16.msra.mxu0 %v911
    %989 = vmatmul.bf16.gmra.mxu0 %v743
    %v990 = vpop.f32.mrf.mxu0
    %v991 = vadd.f32 %v972, %v990
    %v992 = vpop.f32.mrf.mxu0
    %v993 = vadd.f32 %v974, %v992
    %994 = vmatmul.bf16.gmra.mxu0 %v746
    %v995 = vpop.f32.mrf.mxu0
    %v996 = vadd.f32 %v977, %v995
    %v997 = vpop.f32.mrf.mxu0
    %v998 = vadd.f32 %v979, %v997
    %999 = vdwg.mxu0
    %v1000 = vmax.f32 %v991, 0.0
    %v1001 = vmax.f32 %v993, 0.0
    %v1002 = vmax.f32 %v996, 0.0
    %v1003 = vmax.f32 %v998, 0.0
    %v1004 = vld [vmem:[%s7] sm:$0xff]
    %v1005 = vld [vmem:[%s7 + $0x8] sm:$0xff]
    %v1006 = vld [vmem:[%s7 + $0x10] sm:$0xff]
    %v1007 = vld [vmem:[%s7 + $0x18] sm:$0xff]
    %v1008 = vmul.f32 %v579, %v1004
    %v1009 = vmul.f32 %v580, %v1005
    %v1010 = vmul.f32 %v581, %v1006
    %v1011 = vmul.f32 %v582, %v1007
    %1012 = vadd.xlane.f32.xlu0 %v1008
    %v1013 = vpop.xlane.xlu0 %1012
    %1014 = vadd.xlane.f32.xlu0 %v1009
    %v1015 = vpop.xlane.xlu0 %1014
    %1016 = vadd.xlane.f32.xlu0 %v1010
    %v1017 = vpop.xlane.xlu0 %1016
    %1018 = vadd.xlane.f32.xlu0 %v1011
    %v1019 = vpop.xlane.xlu0 %1018
    %v1020 = vld [vmem:[%s8] sm:$0xff]
    %v1021 = vld [vmem:[%s8 + $0x8] sm:$0xff]
    %v1022 = vld [vmem:[%s8 + $0x10] sm:$0xff]
    %v1023 = vld [vmem:[%s8 + $0x18] sm:$0xff]
    %v1024 = vmul.f32 %v1000, %v1020
    %v1025 = vmul.f32 %v1001, %v1021
    %v1026 = vmul.f32 %v1002, %v1022
    %v1027 = vmul.f32 %v1003, %v1023
    %1028 = vadd.xlane.f32.xlu0 %v1024
    %v1029 = vpop.xlane.xlu0 %1028
    %1030 = vadd.xlane.f32.xlu0 %v1025
    %v1031 = vpop.xlane.xlu0 %1030
    %1032 = vadd.xlane.f32.xlu0 %v1026
    %v1033 = vpop.xlane.xlu0 %1032
    %1034 = vadd.xlane.f32.xlu0 %v1027
    %v1035 = vpop.xlane.xlu0 %1034
    %v1036 = vadd.f32 %v1013, %v1029
    %v1037 = vadd.f32 %v1015, %v1031
    %v1038 = vadd.f32 %v1017, %v1033
    %v1039 = vadd.f32 %v1019, %v1035
    %s1040 = scalar_lea.vmem %s7, 32
    %v1041 = vld [vmem:[%s1040] sm:$0xff]
    %v1042 = vld [vmem:[%s1040 + $0x8] sm:$0xff]
    %v1043 = vld [vmem:[%s1040 + $0x10] sm:$0xff]
    %v1044 = vld [vmem:[%s1040 + $0x18] sm:$0xff]
    %v1045 = vmul.f32 %v579, %v1041
    %v1046 = vmul.f32 %v580, %v1042
    %v1047 = vmul.f32 %v581, %v1043
    %v1048 = vmul.f32 %v582, %v1044
    %1049 = vadd.xlane.f32.xlu0 %v1045
    %v1050 = vpop.xlane.xlu0 %1049
    %1051 = vadd.xlane.f32.xlu0 %v1046
    %v1052 = vpop.xlane.xlu0 %1051
    %1053 = vadd.xlane.f32.xlu0 %v1047
    %v1054 = vpop.xlane.xlu0 %1053
    %1055 = vadd.xlane.f32.xlu0 %v1048
    %v1056 = vpop.xlane.xlu0 %1055
    %s1057 = scalar_lea.vmem %s8, 32
    %v1058 = vld [vmem:[%s1057] sm:$0xff]
    %v1059 = vld [vmem:[%s1057 + $0x8] sm:$0xff]
    %v1060 = vld [vmem:[%s1057 + $0x10] sm:$0xff]
    %v1061 = vld [vmem:[%s1057 + $0x18] sm:$0xff]
    %v1062 = vmul.f32 %v1000, %v1058
    %v1063 = vmul.f32 %v1001, %v1059
    %v1064 = vmul.f32 %v1002, %v1060
    %v1065 = vmul.f32 %v1003, %v1061
    %1066 = vadd.xlane.f32.xlu0 %v1062
    %v1067 = vpop.xlane.xlu0 %1066
    %1068 = vadd.xlane.f32.xlu0 %v1063
    %v1069 = vpop.xlane.xlu0 %1068
    %1070 = vadd.xlane.f32.xlu0 %v1064
    %v1071 = vpop.xlane.xlu0 %1070
    %1072 = vadd.xlane.f32.xlu0 %v1065
    %v1073 = vpop.xlane.xlu0 %1072
    %v1074 = vadd.f32 %v1050, %v1067
    %v1075 = vadd.f32 %v1052, %v1069
    %v1076 = vadd.f32 %v1054, %v1071
    %v1077 = vadd.f32 %v1056, %v1073
    %s1078 = scalar_lea.vmem %s7, 64
    %v1079 = vld [vmem:[%s1078] sm:$0xff]
    %v1080 = vld [vmem:[%s1078 + $0x8] sm:$0xff]
    %v1081 = vld [vmem:[%s1078 + $0x10] sm:$0xff]
    %v1082 = vld [vmem:[%s1078 + $0x18] sm:$0xff]
    %v1083 = vmul.f32 %v579, %v1079
    %v1084 = vmul.f32 %v580, %v1080
    %v1085 = vmul.f32 %v581, %v1081
    %v1086 = vmul.f32 %v582, %v1082
    %1087 = vadd.xlane.f32.xlu0 %v1083
    %v1088 = vpop.xlane.xlu0 %1087
    %1089 = vadd.xlane.f32.xlu0 %v1084
    %v1090 = vpop.xlane.xlu0 %1089
    %1091 = vadd.xlane.f32.xlu0 %v1085
    %v1092 = vpop.xlane.xlu0 %1091
    %1093 = vadd.xlane.f32.xlu0 %v1086
    %v1094 = vpop.xlane.xlu0 %1093
    %s1095 = scalar_lea.vmem %s8, 64
    %v1096 = vld [vmem:[%s1095] sm:$0xff]
    %v1097 = vld [vmem:[%s1095 + $0x8] sm:$0xff]
    %v1098 = vld [vmem:[%s1095 + $0x10] sm:$0xff]
    %v1099 = vld [vmem:[%s1095 + $0x18] sm:$0xff]
    %v1100 = vmul.f32 %v1000, %v1096
    %v1101 = vmul.f32 %v1001, %v1097
    %v1102 = vmul.f32 %v1002, %v1098
    %v1103 = vmul.f32 %v1003, %v1099
    %1104 = vadd.xlane.f32.xlu0 %v1100
    %v1105 = vpop.xlane.xlu0 %1104
    %1106 = vadd.xlane.f32.xlu0 %v1101
    %v1107 = vpop.xlane.xlu0 %1106
    %1108 = vadd.xlane.f32.xlu0 %v1102
    %v1109 = vpop.xlane.xlu0 %1108
    %1110 = vadd.xlane.f32.xlu0 %v1103
    %v1111 = vpop.xlane.xlu0 %1110
    %v1112 = vadd.f32 %v1088, %v1105
    %v1113 = vadd.f32 %v1090, %v1107
    %v1114 = vadd.f32 %v1092, %v1109
    %v1115 = vadd.f32 %v1094, %v1111
    %s1116 = scalar_lea.vmem %s7, 96
    %v1117 = vld [vmem:[%s1116] sm:$0xff]
    %v1118 = vld [vmem:[%s1116 + $0x8] sm:$0xff]
    %v1119 = vld [vmem:[%s1116 + $0x10] sm:$0xff]
    %v1120 = vld [vmem:[%s1116 + $0x18] sm:$0xff]
    %v1121 = vmul.f32 %v579, %v1117
    %v1122 = vmul.f32 %v580, %v1118
    %v1123 = vmul.f32 %v581, %v1119
    %v1124 = vmul.f32 %v582, %v1120
    %1125 = vadd.xlane.f32.xlu0 %v1121
    %v1126 = vpop.xlane.xlu0 %1125
    %1127 = vadd.xlane.f32.xlu0 %v1122
    %v1128 = vpop.xlane.xlu0 %1127
    %1129 = vadd.xlane.f32.xlu0 %v1123
    %v1130 = vpop.xlane.xlu0 %1129
    %1131 = vadd.xlane.f32.xlu0 %v1124
    %v1132 = vpop.xlane.xlu0 %1131
    %s1133 = scalar_lea.vmem %s8, 96
    %v1134 = vld [vmem:[%s1133] sm:$0xff]
    %v1135 = vld [vmem:[%s1133 + $0x8] sm:$0xff]
    %v1136 = vld [vmem:[%s1133 + $0x10] sm:$0xff]
    %v1137 = vld [vmem:[%s1133 + $0x18] sm:$0xff]
    %v1138 = vmul.f32 %v1000, %v1134
    %v1139 = vmul.f32 %v1001, %v1135
    %v1140 = vmul.f32 %v1002, %v1136
    %v1141 = vmul.f32 %v1003, %v1137
    %1142 = vadd.xlane.f32.xlu0 %v1138
    %v1143 = vpop.xlane.xlu0 %1142
    %1144 = vadd.xlane.f32.xlu0 %v1139
    %v1145 = vpop.xlane.xlu0 %1144
    %1146 = vadd.xlane.f32.xlu0 %v1140
    %v1147 = vpop.xlane.xlu0 %1146
    %1148 = vadd.xlane.f32.xlu0 %v1141
    %v1149 = vpop.xlane.xlu0 %1148
    %v1150 = vadd.f32 %v1126, %v1143
    %v1151 = vadd.f32 %v1128, %v1145
    %v1152 = vadd.f32 %v1130, %v1147
    %v1153 = vadd.f32 %v1132, %v1149
    %s1154 = scalar_lea.vmem %s7, 128
    %v1155 = vld [vmem:[%s1154] sm:$0xff]
    %v1156 = vld [vmem:[%s1154 + $0x8] sm:$0xff]
    %v1157 = vld [vmem:[%s1154 + $0x10] sm:$0xff]
    %v1158 = vld [vmem:[%s1154 + $0x18] sm:$0xff]
    %v1159 = vmul.f32 %v579, %v1155
    %v1160 = vmul.f32 %v580, %v1156
    %v1161 = vmul.f32 %v581, %v1157
    %v1162 = vmul.f32 %v582, %v1158
    %1163 = vadd.xlane.f32.xlu0 %v1159
    %v1164 = vpop.xlane.xlu0 %1163
    %1165 = vadd.xlane.f32.xlu0 %v1160
    %v1166 = vpop.xlane.xlu0 %1165
    %1167 = vadd.xlane.f32.xlu0 %v1161
    %v1168 = vpop.xlane.xlu0 %1167
    %1169 = vadd.xlane.f32.xlu0 %v1162
    %v1170 = vpop.xlane.xlu0 %1169
    %s1171 = scalar_lea.vmem %s8, 128
    %v1172 = vld [vmem:[%s1171] sm:$0xff]
    %v1173 = vld [vmem:[%s1171 + $0x8] sm:$0xff]
    %v1174 = vld [vmem:[%s1171 + $0x10] sm:$0xff]
    %v1175 = vld [vmem:[%s1171 + $0x18] sm:$0xff]
    %v1176 = vmul.f32 %v1000, %v1172
    %v1177 = vmul.f32 %v1001, %v1173
    %v1178 = vmul.f32 %v1002, %v1174
    %v1179 = vmul.f32 %v1003, %v1175
    %1180 = vadd.xlane.f32.xlu0 %v1176
    %v1181 = vpop.xlane.xlu0 %1180
    %1182 = vadd.xlane.f32.xlu0 %v1177
    %v1183 = vpop.xlane.xlu0 %1182
    %1184 = vadd.xlane.f32.xlu0 %v1178
    %v1185 = vpop.xlane.xlu0 %1184
    %1186 = vadd.xlane.f32.xlu0 %v1179
    %v1187 = vpop.xlane.xlu0 %1186
    %v1188 = vadd.f32 %v1164, %v1181
    %v1189 = vadd.f32 %v1166, %v1183
    %v1190 = vadd.f32 %v1168, %v1185
    %v1191 = vadd.f32 %v1170, %v1187
    %s1192 = scalar_lea.vmem %s7, 160
    %v1193 = vld [vmem:[%s1192] sm:$0xff]
    %v1194 = vld [vmem:[%s1192 + $0x8] sm:$0xff]
    %v1195 = vld [vmem:[%s1192 + $0x10] sm:$0xff]
    %v1196 = vld [vmem:[%s1192 + $0x18] sm:$0xff]
    %v1197 = vmul.f32 %v579, %v1193
    %v1198 = vmul.f32 %v580, %v1194
    %v1199 = vmul.f32 %v581, %v1195
    %v1200 = vmul.f32 %v582, %v1196
    %1201 = vadd.xlane.f32.xlu0 %v1197
    %v1202 = vpop.xlane.xlu0 %1201
    %1203 = vadd.xlane.f32.xlu0 %v1198
    %v1204 = vpop.xlane.xlu0 %1203
    %1205 = vadd.xlane.f32.xlu0 %v1199
    %v1206 = vpop.xlane.xlu0 %1205
    %1207 = vadd.xlane.f32.xlu0 %v1200
    %v1208 = vpop.xlane.xlu0 %1207
    %s1209 = scalar_lea.vmem %s8, 160
    %v1210 = vld [vmem:[%s1209] sm:$0xff]
    %v1211 = vld [vmem:[%s1209 + $0x8] sm:$0xff]
    %v1212 = vld [vmem:[%s1209 + $0x10] sm:$0xff]
    %v1213 = vld [vmem:[%s1209 + $0x18] sm:$0xff]
    %v1214 = vmul.f32 %v1000, %v1210
    %v1215 = vmul.f32 %v1001, %v1211
    %v1216 = vmul.f32 %v1002, %v1212
    %v1217 = vmul.f32 %v1003, %v1213
    %1218 = vadd.xlane.f32.xlu0 %v1214
    %v1219 = vpop.xlane.xlu0 %1218
    %1220 = vadd.xlane.f32.xlu0 %v1215
    %v1221 = vpop.xlane.xlu0 %1220
    %1222 = vadd.xlane.f32.xlu0 %v1216
    %v1223 = vpop.xlane.xlu0 %1222
    %1224 = vadd.xlane.f32.xlu0 %v1217
    %v1225 = vpop.xlane.xlu0 %1224
    %v1226 = vadd.f32 %v1202, %v1219
    %v1227 = vadd.f32 %v1204, %v1221
    %v1228 = vadd.f32 %v1206, %v1223
    %v1229 = vadd.f32 %v1208, %v1225
    %vm1230 = vcmask 7168
    %v1231 = vsel %vm1230, %v1036, %v1074
    %v1232 = vsel %vm1230, %v1037, %v1075
    %v1233 = vsel %vm1230, %v1038, %v1076
    %v1234 = vsel %vm1230, %v1039, %v1077
    %vm1235 = vcmask 15360
    %v1236 = vsel %vm1235, %v1231, %v1112
    %v1237 = vsel %vm1235, %v1232, %v1113
    %v1238 = vsel %vm1235, %v1233, %v1114
    %v1239 = vsel %vm1235, %v1234, %v1115
    %vm1240 = vcmask 23552
    %v1241 = vsel %vm1240, %v1236, %v1150
    %v1242 = vsel %vm1240, %v1237, %v1151
    %v1243 = vsel %vm1240, %v1238, %v1152
    %v1244 = vsel %vm1240, %v1239, %v1153
    %vm1245 = vcmask 31744
    %v1246 = vsel %vm1245, %v1241, %v1188
    %v1247 = vsel %vm1245, %v1242, %v1189
    %v1248 = vsel %vm1245, %v1243, %v1190
    %v1249 = vsel %vm1245, %v1244, %v1191
    %vm1250 = vcmask 39936
    %v1251 = vsel %vm1250, %v1246, %v1226
    %v1252 = vsel %vm1250, %v1247, %v1227
    %v1253 = vsel %vm1250, %v1248, %v1228
    %v1254 = vsel %vm1250, %v1249, %v1229
    %v1255 = vld [vmem:[%s9] sm:$0x3]
    %v1256 = vld [vmem:[%s10] sm:$0x1]
    %v1258 = vperm.slane %v1256, 0
    %vm1260 = vcmask 261120
    %v1262 = vsel %vm1260, %v1255, 0
    %1264 = vmatpush.msra.mxu0 0.0
    %1265 = vmatpush.msra.mxu0 0.0
    %1266 = vmatpush.msra.mxu0 0.0
    %1267 = vmatpush.msra.mxu0 0.0
    %1268 = vmatpush.msra.mxu0 0.0
    %1269 = vmatpush.msra.mxu0 0.0
    %1270 = vmatpush.msra.mxu0 0.0
    %1271 = vmatpush.msra.mxu0 0.0
    %1272 = vmatpush.msra.mxu0 0.0
    %1273 = vmatpush.msra.mxu0 0.0
    %1274 = vmatpush.msra.mxu0 0.0
    %1275 = vmatpush.msra.mxu0 0.0
    %1276 = vmatpush.msra.mxu0 %v1254
    %1277 = vmatpush.msra.mxu0 %v1253
    %1278 = vmatpush.msra.mxu0 %v1252
    %1279 = vmatpush.msra.mxu0 %v1251
    %1280 = vmatmul.f32.gmra.mxu0 %v1262
    %v1281 = vpop.f32.mrf.mxu0
    %v1282 = vadd.f32 %v1258, %v1281
    %1283 = vdwg.mxu0
    %vm1284 = vcmp.gt.f32.partialorder %v1282, 20.0
    %v1285 = vmin.f32 %v1282, 20.0
    %v1286 = vmul.f32 %v1285, 1.442695
    %v1287 = vpow.pop %v1286
    %v1288 = vadd.f32 %v1287, 1.0
    %v1289 = vlog2.pop %v1288
    %v1290 = vmul.f32 %v1289, 0.6931472
    %v1291 = vmul.f32 -0.5, %v1287
    %v1292 = vadd.f32 %v1291, 1.0
    %v1293 = vmul.f32 %v1292, %v1287
    %v1294 = vand.u32 2147483647, %v1287
    %vm1295 = vcmp.lt.f32.partialorder %v1294, 0.0004427343
    %v1296 = vsel %vm1295, %v1293, %v1290
    %v1297 = vsel %vm1284, %v1282, %v1296
    %vm1298 = vcmask 41984
    %1299 = vst.msk [vmem:[#allocation2] sm:$0x3] %vm1298, %v1297
    // Predicated region
    $region46: #{cnn_dense_forward.1} parent=1 // pred_check
      _
    $region47: #{cnn_dense_forward.1} parent=1 // pred_check_branch
      %1301 = sbr.rel (0) target = $region49
    $region48: #{cnn_dense_forward.1} parent=1 // pred_region
      %1303 = vsyncadd [#allocation3], 0
      %s1305 = sshll.u32 [#allocation2], 4
      %s1306 = int_to_ptr.vmem [resolvable:$true] %s1305
      %s1307 = sshll.u32 %s11, 4
      %s1308 = int_to_ptr.hbm [resolvable:$true] %s1307
      %1310 = dma.vmem_to_hbm [thread:$0]  %s1306, 32, %s1308, [#allocation3]
    $region49: #{cnn_dense_forward.1} parent=1 // pred_fallthru
      _
    // Predicated region
    $region50: #{cnn_dense_forward.1} parent=1 // pred_check
      _
    $region51: #{cnn_dense_forward.1} parent=1 // pred_check_branch
      %1312 = sbr.rel (0) target = $region53
    $region52: #{cnn_dense_forward.1} parent=1 // pred_region
      %1314 = dma.done [#allocation3], 32
    $region53: #{cnn_dense_forward.1} parent=1 // pred_fallthru
      _
    %1315 = vsyncpa [#allocation3], 1

</llo_original>
